<compile_context>
chip_gen: v5e
topology: v5e:2x2
jax: 0.10.0
libtpu: 0.0.40
codegen_flags: <defaults>
</compile_context>

<pallas_src>
import functools
import math

import numpy as np
import jax
import jax.numpy as jnp
from jax.experimental import pallas as pl
from jax.experimental.pallas import tpu as pltpu

# ---- synthetic SLAYER neuron / simulation parameters (deterministic) -------
THETA = 1.0       # firing threshold       (neuron['theta'])
TAU_SR = 4.0      # PSP time constant      (neuron['tauSr'])
TAU_REF = 2.0     # refractory constant    (neuron['tauRef'])
SCALE_REF = 2.0   # refractory scale       (neuron['scaleRef'])
TS = 1.0          # simulation time step   (simulation['Ts'])

# 2-state IIR parameters of the alpha refractory kernel:
#   refk[j] = -scaleRef*theta*(j*Ts/tauRef)*exp(1 - j*Ts/tauRef) = C_REF * j * A_REF**j
_A_REF = math.exp(-TS / TAU_REF)
_C_REF = -SCALE_REF * THETA * math.e * TS / TAU_REF


def _psp_toeplitz_np(t_len):
    """Causal Toeplitz operator of the SRM alpha kernel so psp = toep @ act
    for time-major activations act of shape (T, R).  Host-side, cached per T."""
    ts = np.arange(t_len, dtype=np.float64) * TS
    srm = (ts / TAU_SR) * np.exp(1.0 - ts / TAU_SR)
    diff = np.arange(t_len)[:, None] - np.arange(t_len)[None, :]
    toep = np.where(diff >= 0, srm[np.clip(diff, 0, t_len - 1)], 0.0)
    return toep.astype(np.float32)


# --------------------------- in-kernel helpers -------------------------------
def _spike_rows(u, out_ref):
    """SLAYER spike function with alpha refractory response.

    u:       (T, R) membrane potential (time on sublanes, R neurons on lanes).
    out_ref: (T, R) VMEM ref; spike rows are stored one per step (idle vst slot)
             instead of being concatenated from vregs.

    Refractory convolution = exact 2-state linear IIR with C_REF folded into the
    state; threshold hoisted out of the loop -> ~3 dependent VPU ops/step.
    """
    t_len, r = u.shape
    thr = THETA - u                                  # one vectorized op, off the chain
    p = jnp.zeros((1, r), jnp.float32)               # C_REF-scaled refractory state
    q = jnp.zeros((1, r), jnp.float32)
    for t in range(t_len):                           # static T -> fully unrolled
        p = _A_REF * (p + q)
        spk = (p >= thr[t:t + 1, :]).astype(jnp.float32)
        out_ref[pl.ds(t, 1), :] = spk if TS == 1.0 else spk * (1.0 / TS)
        q = _A_REF * q + _C_REF * spk


def _bdense(a, w, nb):
    """Per-timestep dense layer with a SHARED weight on a lane-folded batch slab.

    a: (T, nb*cin), w: (cin, cout) -> (T, nb*cout).
    Mathematically the block-diagonal matmul, but without materializing the
    N^2-sized kron(eye(nb), w) weight: nb tiny MXU matmuls (nb is static).
    """
    cin = w.shape[0]
    if nb == 1:
        return jnp.dot(a, w, preferred_element_type=jnp.float32)
    outs = [jnp.dot(a[:, i * cin:(i + 1) * cin], w,
                    preferred_element_type=jnp.float32) for i in range(nb)]
    return jnp.concatenate(outs, axis=-1)


def _vae_fused_kernel(nb, latent, x_ref, eps_ref, toep_ref, w1e_ref, wh_ref,
                      w1d_ref, w2d_ref, recon_ref, ml_ref, spk_scr):
    """One grid step = one batch shard; everything resident in VMEM/vregs."""
    toep = toep_ref[...]                             # (T, T), loaded once
    w1e = w1e_ref[...]                               # (F, H)
    wh = wh_ref[...]                                 # (H, 2L)  fused mean|log_var head
    w1d = w1d_ref[...]                               # (L, H)
    w2d = w2d_ref[...]                               # (H, O)
    eps = eps_ref[...]                               # (1, nb*L), constant over time

    def psp(a):                                      # causal SRM filter along time (MXU)
        return jnp.dot(toep, a, preferred_element_type=jnp.float32)

    # ----------------- Encoder (vae=True path) -----------------
    # x -> psp -> fc1 -> spike ; then psp -> fused {fc_mean | fc_log_var}
    _spike_rows(_bdense(psp(x_ref[...]), w1e, nb), spk_scr)          # s1 -> scratch
    p1 = psp(spk_scr[...])                                           # shared by both heads
    ml = _bdense(p1, wh, nb)                                         # (T, nb*2L)
    ml_ref[...] = ml                                                 # merged output

    # ----------------- Reparameterisation -----------------
    # z = eps * exp(0.5*log_var) + means    (eps constant along time)
    two_l = 2 * latent
    zs = []
    for i in range(nb):
        m_i = ml[:, i * two_l: i * two_l + latent]
        lv_i = ml[:, i * two_l + latent: (i + 1) * two_l]
        e_i = eps[:, i * latent: (i + 1) * latent]                   # broadcasts over T
        zs.append(e_i * jnp.exp(0.5 * lv_i) + m_i)
    z = zs[0] if nb == 1 else jnp.concatenate(zs, axis=-1)           # (T, nb*L)

    # ----------------- Decoder (vae=False path) -----------------
    # z -> psp -> fc1 -> spike -> psp -> fc2 -> spike
    _spike_rows(_bdense(psp(z), w1d, nb), spk_scr)                   # s2 reuses scratch
    _spike_rows(_bdense(psp(spk_scr[...]), w2d, nb), recon_ref)      # rows -> output ref


# --------------------------------- model --------------------------------------
class VAEPallas:
    """Pallas TPU port of models/Autoencoder.VAE (SLAYER spiking VAE)."""

    def __init__(self, input_size=(4, 4, 1), output_size=16, hidden_size=32,
                 latent_size=4, *, key, batch_shards=1):
        hh, ww, cc = input_size
        self.in_features = hh * ww * cc
        self.hidden_size = hidden_size
        self.latent_size = latent_size
        self.output_size = output_size
        self.batch_shards = batch_shards
        # recon is reshaped like x.reshape(-1, 1, 28, 28, T) in the original
        self.out_h = int(round(math.sqrt(output_size)))
        self.out_w = output_size // self.out_h
        assert self.out_h * self.out_w == output_size

        k1, k2, k3, k4, k5 = jax.random.split(key, 5)
        f, h, l, o = self.in_features, hidden_size, latent_size, output_size
        # slayer.dense == Conv3d(1x1x1 over time, bias=False) == per-timestep linear
        w1e = jax.random.normal(k1, (h, f), jnp.float32) * (4.0 / math.sqrt(f))
        wm = jax.random.normal(k2, (l, h), jnp.float32) * (1.0 / math.sqrt(h))
        wv = jax.random.normal(k3, (l, h), jnp.float32) * (1.0 / math.sqrt(h))
        w1d = jax.random.normal(k4, (h, l), jnp.float32) * (4.0 / math.sqrt(l))
        w2d = jax.random.normal(k5, (o, h), jnp.float32) * (4.0 / math.sqrt(h))

        # Hoisted, N-independent kernel operands (review: no per-call prep, no kron):
        self.w1e_t = jnp.asarray(w1e.T)                        # (F, H)
        self.w_heads = jnp.concatenate([wm.T, wv.T], axis=1)   # (H, 2L) fused heads
        self.w1d_t = jnp.asarray(w1d.T)                        # (L, H)
        self.w2d_t = jnp.asarray(w2d.T)                        # (H, O)

        self._toep_cache = {}                                  # T -> (T, T) SRM operator
        self._forward = jax.jit(self._forward_impl)

    def _forward_impl(self, x, toep, eps_key):
        # x: (N, C, H, W, T) input spike train, SLAYER 5-D layout
        n = x.shape[0]
        t = x.shape[-1]
        f, h, l, o = self.in_features, self.hidden_size, self.latent_size, self.output_size
        s = self.batch_shards
        assert n % s == 0, "batch must divide batch_shards"
        nb = n // s

        # Per-shard time-major slabs (T on sublanes, batch*features folded on lanes).
        x_s = (x.reshape(n, f, t)
                 .reshape(s, nb, f, t)
                 .transpose(0, 3, 1, 2)
                 .reshape(s, t, nb * f))

        # eps ~ Normal(0, 1): one draw per (batch, latent); constant along time
        # (broadcast in-kernel -> no (T, N*L) input DMA).
        eps = jax.random.normal(eps_key, (n, l), jnp.float32)
        eps_s = eps.reshape(s, 1, nb * l)

        # VMEM budget from actual per-step buffer sizes (x8 for double-buffering +
        # compiler scratch), capped at v7x's 64 MiB physical VMEM.
        blk_elems = (t * nb * f + nb * l + t * t + f * h + h * 2 * l + l * h + h * o
                     + t * nb * o + t * nb * 2 * l + t * nb * h)
        vmem_limit = int(min(max(8 * 4 * blk_elems, 8 << 20), 64 << 20))

        kernel = functools.partial(_vae_fused_kernel, nb, l)

        recon_s, ml_s = pl.pallas_call(
            kernel,
            out_shape=(
                jax.ShapeDtypeStruct((s, t, nb * o), jnp.float32),        # recon spikes
                jax.ShapeDtypeStruct((s, t, nb * 2 * l), jnp.float32),    # [mean | log_var]
            ),
            grid_spec=pltpu.PrefetchScalarGridSpec(
                num_scalar_prefetch=0,
                grid=(s,),                                    # batch shards (parallel)
                in_specs=[
                    pl.BlockSpec((None, t, nb * f), lambda g: (g, 0, 0)),      # x slab
                    pl.BlockSpec((None, 1, nb * l), lambda g: (g, 0, 0)),      # eps row
                    pl.BlockSpec((t, t), lambda g: (0, 0)),                    # SRM Toeplitz
                    pl.BlockSpec((f, h), lambda g: (0, 0)),                    # enc fc1
                    pl.BlockSpec((h, 2 * l), lambda g: (0, 0)),                # fused heads
                    pl.BlockSpec((l, h), lambda g: (0, 0)),                    # dec fc1
                    pl.BlockSpec((h, o), lambda g: (0, 0)),                    # dec fc2
                ],
                out_specs=[
                    pl.BlockSpec((None, t, nb * o), lambda g: (g, 0, 0)),
                    pl.BlockSpec((None, t, nb * 2 * l), lambda g: (g, 0, 0)),
                ],
                scratch_shapes=[pltpu.VMEM((t, nb * h), jnp.float32)],    # spike rows
            ),
            compiler_params=pltpu.CompilerParams(
                dimension_semantics=("parallel",),
                vmem_limit_bytes=vmem_limit),
        )(x_s, eps_s, toep, self.w1e_t, self.w_heads, self.w1d_t, self.w2d_t)

        # back to SLAYER layouts (cheap XLA reshapes/transposes outside the kernel)
        recon = (recon_s.reshape(s, t, nb, o)
                         .transpose(0, 2, 3, 1)
                         .reshape(n, o, t)
                         .reshape(n, 1, self.out_h, self.out_w, t))
        ml5 = ml_s.reshape(s, t, nb, 2, l)
        means = ml5[:, :, :, 0, :].transpose(0, 2, 3, 1).reshape(n, l, t)
        log_var = ml5[:, :, :, 1, :].transpose(0, 2, 3, 1).reshape(n, l, t)
        return recon, means[:, :, None, None, :], log_var[:, :, None, None, :]

    def __call__(self, x, eps_key):
        t = int(x.shape[-1])
        if t not in self._toep_cache:
            self._toep_cache[t] = jnp.asarray(_psp_toeplitz_np(t))
        return self._forward(x, self._toep_cache[t], eps_key)


if __name__ == "__main__":
    key = jax.random.PRNGKey(0)
    kx, kp, ke = jax.random.split(key, 3)

    N, T = 2, 16
    Hh, Ww = 4, 4                      # scaled-down "28x28" spatial grid
    hidden, latent = 32, 4
    output_size = Hh * Ww              # 16 -> recon reshapes to (N, 1, 4, 4, T)

    # batch_shards=1 keeps the whole batch lock-stepped in one grid step (best on
    # the single-TensorCore v5e/v6e); on v7x pass batch_shards=2 to shard the
    # parallel batch grid across its two TensorCores.
    model = VAEPallas(input_size=(Hh, Ww, 1), output_size=output_size,
                      hidden_size=hidden, latent_size=latent, key=kp,
                      batch_shards=1)

    # deterministic binary input spike train, SLAYER 5-D layout (N, C, H, W, T)
    x = jax.random.bernoulli(kx, 0.3, (N, 1, Hh, Ww, T)).astype(jnp.float32) / TS

    recon, means, log_var = model(x, ke)
    jax.block_until_ready((recon, means, log_var))

    assert recon.shape == (N, 1, Hh, Ww, T)
    assert means.shape == (N, latent, 1, 1, T)
    assert log_var.shape == (N, latent, 1, 1, T)
    assert recon.dtype == jnp.float32
    assert bool(jnp.all(jnp.isfinite(recon)))
    assert bool(jnp.all(jnp.isfinite(means)))
    assert bool(jnp.all(jnp.isfinite(log_var)))
    print("KERNEL_OK")
</pallas_src>

<mosaic_0001>
module attributes {stable_mosaic.version = 11 : i64} {
  func.func @_vae_fused_kernel(%arg0: i32, %arg1: memref<1x16x32xf32, #tpu.memory_space<vmem>>, %arg2: memref<1x1x8xf32, #tpu.memory_space<vmem>>, %arg3: memref<16x16xf32, #tpu.memory_space<vmem>>, %arg4: memref<16x32xf32, #tpu.memory_space<vmem>>, %arg5: memref<32x8xf32, #tpu.memory_space<vmem>>, %arg6: memref<4x32xf32, #tpu.memory_space<vmem>>, %arg7: memref<32x16xf32, #tpu.memory_space<vmem>>, %arg8: memref<1x16x32xf32, #tpu.memory_space<vmem>>, %arg9: memref<1x16x16xf32, #tpu.memory_space<vmem>>, %arg10: memref<16x64xf32, #tpu.memory_space<vmem>>) attributes {dimension_semantics = [#tpu.dimension_semantics<parallel>], iteration_bounds = array<i64: 1>, scalar_prefetch = 0 : i64, scratch_operands = 1 : i64, tpu.core_type = #tpu.core_type<tc>, window_params = [{transform_indices = @transform_0, window_bounds = array<i64: 1, 16, 32>}, {transform_indices = @transform_1, window_bounds = array<i64: 1, 1, 8>}, {pipeline_mode = #tpu.pipeline_mode<synchronous>, transform_indices = @transform_2, window_bounds = array<i64: 16, 16>}, {pipeline_mode = #tpu.pipeline_mode<synchronous>, transform_indices = @transform_3, window_bounds = array<i64: 16, 32>}, {pipeline_mode = #tpu.pipeline_mode<synchronous>, transform_indices = @transform_4, window_bounds = array<i64: 32, 8>}, {pipeline_mode = #tpu.pipeline_mode<synchronous>, transform_indices = @transform_5, window_bounds = array<i64: 4, 32>}, {pipeline_mode = #tpu.pipeline_mode<synchronous>, transform_indices = @transform_6, window_bounds = array<i64: 32, 16>}, {transform_indices = @transform_7, window_bounds = array<i64: 1, 16, 32>}, {transform_indices = @transform_8, window_bounds = array<i64: 1, 16, 16>}]} {
    %c0 = arith.constant 0 : index
    %c0_0 = arith.constant 0 : index
    %0 = vector.load %arg3[%c0, %c0_0] : memref<16x16xf32, #tpu.memory_space<vmem>>, vector<16x16xf32>
    %c0_1 = arith.constant 0 : index
    %c0_2 = arith.constant 0 : index
    %1 = vector.load %arg4[%c0_1, %c0_2] : memref<16x32xf32, #tpu.memory_space<vmem>>, vector<16x32xf32>
    %c0_3 = arith.constant 0 : index
    %c0_4 = arith.constant 0 : index
    %2 = vector.load %arg5[%c0_3, %c0_4] : memref<32x8xf32, #tpu.memory_space<vmem>>, vector<32x8xf32>
    %c0_5 = arith.constant 0 : index
    %c0_6 = arith.constant 0 : index
    %3 = vector.load %arg6[%c0_5, %c0_6] : memref<4x32xf32, #tpu.memory_space<vmem>>, vector<4x32xf32>
    %c0_7 = arith.constant 0 : index
    %c0_8 = arith.constant 0 : index
    %4 = vector.load %arg7[%c0_7, %c0_8] : memref<32x16xf32, #tpu.memory_space<vmem>>, vector<32x16xf32>
    %c0_9 = arith.constant 0 : index
    %c0_10 = arith.constant 0 : index
    %c0_11 = arith.constant 0 : index
    %5 = vector.load %arg2[%c0_9, %c0_10, %c0_11] : memref<1x1x8xf32, #tpu.memory_space<vmem>>, vector<1x1x8xf32>
    %6 = vector.shape_cast %5 : vector<1x1x8xf32> to vector<1x8xf32>
    %c0_12 = arith.constant 0 : index
    %c0_13 = arith.constant 0 : index
    %c0_14 = arith.constant 0 : index
    %7 = vector.load %arg1[%c0_12, %c0_13, %c0_14] : memref<1x16x32xf32, #tpu.memory_space<vmem>>, vector<1x16x32xf32>
    %8 = vector.shape_cast %7 : vector<1x16x32xf32> to vector<16x32xf32>
    %cst = arith.constant dense<0.000000e+00> : vector<16x32xf32>
    %9 = tpu.matmul %0, %8, %cst {dimension_numbers = #tpu.dot_dimension_numbers<[1], [0], [0], [1], [0, 0, 1, 1], [], []>} : vector<16x16xf32>, vector<16x32xf32>, vector<16x32xf32> -> vector<16x32xf32>
    %10 = vector.extract_strided_slice %9 {offsets = [0, 0], sizes = [16, 16], strides = [1, 1]} : vector<16x32xf32> to vector<16x16xf32>
    %cst_15 = arith.constant dense<0.000000e+00> : vector<16x32xf32>
    %11 = tpu.matmul %10, %1, %cst_15 {dimension_numbers = #tpu.dot_dimension_numbers<[1], [0], [0], [1], [0, 0, 1, 1], [], []>} : vector<16x16xf32>, vector<16x32xf32>, vector<16x32xf32> -> vector<16x32xf32>
    %12 = vector.extract_strided_slice %9 {offsets = [0, 16], sizes = [16, 16], strides = [1, 1]} : vector<16x32xf32> to vector<16x16xf32>
    %cst_16 = arith.constant dense<0.000000e+00> : vector<16x32xf32>
    %13 = tpu.matmul %12, %1, %cst_16 {dimension_numbers = #tpu.dot_dimension_numbers<[1], [0], [0], [1], [0, 0, 1, 1], [], []>} : vector<16x16xf32>, vector<16x32xf32>, vector<16x32xf32> -> vector<16x32xf32>
    %14 = tpu.concatenate %11, %13 in 1 : vector<16x32xf32>, vector<16x32xf32> -> vector<16x64xf32>
    %cst_17 = arith.constant 1.000000e+00 : f32
    %15 = vector.broadcast %cst_17 : f32 to vector<16x64xf32>
    %16 = arith.subf %15, %14 : vector<16x64xf32>
    %cst_18 = arith.constant 0.000000e+00 : f32
    %17 = vector.broadcast %cst_18 : f32 to vector<1x64xf32>
    %cst_19 = arith.constant 0.000000e+00 : f32
    %18 = vector.broadcast %cst_19 : f32 to vector<1x64xf32>
    %19 = arith.addf %17, %18 : vector<1x64xf32>
    %cst_20 = arith.constant 0.606530666 : f32
    %20 = vector.broadcast %cst_20 : f32 to vector<1x64xf32>
    %21 = arith.mulf %20, %19 : vector<1x64xf32>
    %22 = vector.extract_strided_slice %16 {offsets = [0, 0], sizes = [1, 64], strides = [1, 1]} : vector<16x64xf32> to vector<1x64xf32>
    %23 = arith.cmpf oge, %21, %22 : vector<1x64xf32>
    %24 = arith.extui %23 : vector<1x64xi1> to vector<1x64xi32>
    %25 = arith.sitofp %24 : vector<1x64xi32> to vector<1x64xf32>
    %c0_21 = arith.constant 0 : index
    %c0_22 = arith.constant 0 : index
    %26 = vector.load %arg10[%c0_21, %c0_22] : memref<16x64xf32, #tpu.memory_space<vmem>>, vector<1x64xf32>
    tpu.vector_store %arg10[%c0_21, %c0_22], %25 {strides = array<i32>} : memref<16x64xf32, #tpu.memory_space<vmem>>, vector<1x64xf32>,
    %cst_23 = arith.constant 0.606530666 : f32
    %27 = vector.broadcast %cst_23 : f32 to vector<1x64xf32>
    %28 = arith.mulf %27, %18 : vector<1x64xf32>
    %cst_24 = arith.constant -2.71828175 : f32
    %29 = vector.broadcast %cst_24 : f32 to vector<1x64xf32>
    %30 = arith.mulf %29, %25 : vector<1x64xf32>
    %31 = arith.addf %28, %30 : vector<1x64xf32>
    %32 = arith.addf %21, %31 : vector<1x64xf32>
    %cst_25 = arith.constant 0.606530666 : f32
    %33 = vector.broadcast %cst_25 : f32 to vector<1x64xf32>
    %34 = arith.mulf %33, %32 : vector<1x64xf32>
    %35 = vector.extract_strided_slice %16 {offsets = [1, 0], sizes = [1, 64], strides = [1, 1]} : vector<16x64xf32> to vector<1x64xf32>
    %36 = arith.cmpf oge, %34, %35 : vector<1x64xf32>
    %37 = arith.extui %36 : vector<1x64xi1> to vector<1x64xi32>
    %38 = arith.sitofp %37 : vector<1x64xi32> to vector<1x64xf32>
    %c1 = arith.constant 1 : index
    %c0_26 = arith.constant 0 : index
    %39 = vector.load %arg10[%c1, %c0_26] : memref<16x64xf32, #tpu.memory_space<vmem>>, vector<1x64xf32>
    tpu.vector_store %arg10[%c1, %c0_26], %38 {strides = array<i32>} : memref<16x64xf32, #tpu.memory_space<vmem>>, vector<1x64xf32>,
    %cst_27 = arith.constant 0.606530666 : f32
    %40 = vector.broadcast %cst_27 : f32 to vector<1x64xf32>
    %41 = arith.mulf %40, %31 : vector<1x64xf32>
    %cst_28 = arith.constant -2.71828175 : f32
    %42 = vector.broadcast %cst_28 : f32 to vector<1x64xf32>
    %43 = arith.mulf %42, %38 : vector<1x64xf32>
    %44 = arith.addf %41, %43 : vector<1x64xf32>
    %45 = arith.addf %34, %44 : vector<1x64xf32>
    %cst_29 = arith.constant 0.606530666 : f32
    %46 = vector.broadcast %cst_29 : f32 to vector<1x64xf32>
    %47 = arith.mulf %46, %45 : vector<1x64xf32>
    %48 = vector.extract_strided_slice %16 {offsets = [2, 0], sizes = [1, 64], strides = [1, 1]} : vector<16x64xf32> to vector<1x64xf32>
    %49 = arith.cmpf oge, %47, %48 : vector<1x64xf32>
    %50 = arith.extui %49 : vector<1x64xi1> to vector<1x64xi32>
    %51 = arith.sitofp %50 : vector<1x64xi32> to vector<1x64xf32>
    %c2 = arith.constant 2 : index
    %c0_30 = arith.constant 0 : index
    %52 = vector.load %arg10[%c2, %c0_30] : memref<16x64xf32, #tpu.memory_space<vmem>>, vector<1x64xf32>
    tpu.vector_store %arg10[%c2, %c0_30], %51 {strides = array<i32>} : memref<16x64xf32, #tpu.memory_space<vmem>>, vector<1x64xf32>,
    %cst_31 = arith.constant 0.606530666 : f32
    %53 = vector.broadcast %cst_31 : f32 to vector<1x64xf32>
    %54 = arith.mulf %53, %44 : vector<1x64xf32>
    %cst_32 = arith.constant -2.71828175 : f32
    %55 = vector.broadcast %cst_32 : f32 to vector<1x64xf32>
    %56 = arith.mulf %55, %51 : vector<1x64xf32>
    %57 = arith.addf %54, %56 : vector<1x64xf32>
    %58 = arith.addf %47, %57 : vector<1x64xf32>
    %cst_33 = arith.constant 0.606530666 : f32
    %59 = vector.broadcast %cst_33 : f32 to vector<1x64xf32>
    %60 = arith.mulf %59, %58 : vector<1x64xf32>
    %61 = vector.extract_strided_slice %16 {offsets = [3, 0], sizes = [1, 64], strides = [1, 1]} : vector<16x64xf32> to vector<1x64xf32>
    %62 = arith.cmpf oge, %60, %61 : vector<1x64xf32>
    %63 = arith.extui %62 : vector<1x64xi1> to vector<1x64xi32>
    %64 = arith.sitofp %63 : vector<1x64xi32> to vector<1x64xf32>
    %c3 = arith.constant 3 : index
    %c0_34 = arith.constant 0 : index
    %65 = vector.load %arg10[%c3, %c0_34] : memref<16x64xf32, #tpu.memory_space<vmem>>, vector<1x64xf32>
    tpu.vector_store %arg10[%c3, %c0_34], %64 {strides = array<i32>} : memref<16x64xf32, #tpu.memory_space<vmem>>, vector<1x64xf32>,
    %cst_35 = arith.constant 0.606530666 : f32
    %66 = vector.broadcast %cst_35 : f32 to vector<1x64xf32>
    %67 = arith.mulf %66, %57 : vector<1x64xf32>
    %cst_36 = arith.constant -2.71828175 : f32
    %68 = vector.broadcast %cst_36 : f32 to vector<1x64xf32>
    %69 = arith.mulf %68, %64 : vector<1x64xf32>
    %70 = arith.addf %67, %69 : vector<1x64xf32>
    %71 = arith.addf %60, %70 : vector<1x64xf32>
    %cst_37 = arith.constant 0.606530666 : f32
    %72 = vector.broadcast %cst_37 : f32 to vector<1x64xf32>
    %73 = arith.mulf %72, %71 : vector<1x64xf32>
    %74 = vector.extract_strided_slice %16 {offsets = [4, 0], sizes = [1, 64], strides = [1, 1]} : vector<16x64xf32> to vector<1x64xf32>
    %75 = arith.cmpf oge, %73, %74 : vector<1x64xf32>
    %76 = arith.extui %75 : vector<1x64xi1> to vector<1x64xi32>
    %77 = arith.sitofp %76 : vector<1x64xi32> to vector<1x64xf32>
    %c4 = arith.constant 4 : index
    %c0_38 = arith.constant 0 : index
    %78 = vector.load %arg10[%c4, %c0_38] : memref<16x64xf32, #tpu.memory_space<vmem>>, vector<1x64xf32>
    tpu.vector_store %arg10[%c4, %c0_38], %77 {strides = array<i32>} : memref<16x64xf32, #tpu.memory_space<vmem>>, vector<1x64xf32>,
    %cst_39 = arith.constant 0.606530666 : f32
    %79 = vector.broadcast %cst_39 : f32 to vector<1x64xf32>
    %80 = arith.mulf %79, %70 : vector<1x64xf32>
    %cst_40 = arith.constant -2.71828175 : f32
    %81 = vector.broadcast %cst_40 : f32 to vector<1x64xf32>
    %82 = arith.mulf %81, %77 : vector<1x64xf32>
    %83 = arith.addf %80, %82 : vector<1x64xf32>
    %84 = arith.addf %73, %83 : vector<1x64xf32>
    %cst_41 = arith.constant 0.606530666 : f32
    %85 = vector.broadcast %cst_41 : f32 to vector<1x64xf32>
    %86 = arith.mulf %85, %84 : vector<1x64xf32>
    %87 = vector.extract_strided_slice %16 {offsets = [5, 0], sizes = [1, 64], strides = [1, 1]} : vector<16x64xf32> to vector<1x64xf32>
    %88 = arith.cmpf oge, %86, %87 : vector<1x64xf32>
    %89 = arith.extui %88 : vector<1x64xi1> to vector<1x64xi32>
    %90 = arith.sitofp %89 : vector<1x64xi32> to vector<1x64xf32>
    %c5 = arith.constant 5 : index
    %c0_42 = arith.constant 0 : index
    %91 = vector.load %arg10[%c5, %c0_42] : memref<16x64xf32, #tpu.memory_space<vmem>>, vector<1x64xf32>
    tpu.vector_store %arg10[%c5, %c0_42], %90 {strides = array<i32>} : memref<16x64xf32, #tpu.memory_space<vmem>>, vector<1x64xf32>,
    %cst_43 = arith.constant 0.606530666 : f32
    %92 = vector.broadcast %cst_43 : f32 to vector<1x64xf32>
    %93 = arith.mulf %92, %83 : vector<1x64xf32>
    %cst_44 = arith.constant -2.71828175 : f32
    %94 = vector.broadcast %cst_44 : f32 to vector<1x64xf32>
    %95 = arith.mulf %94, %90 : vector<1x64xf32>
    %96 = arith.addf %93, %95 : vector<1x64xf32>
    %97 = arith.addf %86, %96 : vector<1x64xf32>
    %cst_45 = arith.constant 0.606530666 : f32
    %98 = vector.broadcast %cst_45 : f32 to vector<1x64xf32>
    %99 = arith.mulf %98, %97 : vector<1x64xf32>
    %100 = vector.extract_strided_slice %16 {offsets = [6, 0], sizes = [1, 64], strides = [1, 1]} : vector<16x64xf32> to vector<1x64xf32>
    %101 = arith.cmpf oge, %99, %100 : vector<1x64xf32>
    %102 = arith.extui %101 : vector<1x64xi1> to vector<1x64xi32>
    %103 = arith.sitofp %102 : vector<1x64xi32> to vector<1x64xf32>
    %c6 = arith.constant 6 : index
    %c0_46 = arith.constant 0 : index
    %104 = vector.load %arg10[%c6, %c0_46] : memref<16x64xf32, #tpu.memory_space<vmem>>, vector<1x64xf32>
    tpu.vector_store %arg10[%c6, %c0_46], %103 {strides = array<i32>} : memref<16x64xf32, #tpu.memory_space<vmem>>, vector<1x64xf32>,
    %cst_47 = arith.constant 0.606530666 : f32
    %105 = vector.broadcast %cst_47 : f32 to vector<1x64xf32>
    %106 = arith.mulf %105, %96 : vector<1x64xf32>
    %cst_48 = arith.constant -2.71828175 : f32
    %107 = vector.broadcast %cst_48 : f32 to vector<1x64xf32>
    %108 = arith.mulf %107, %103 : vector<1x64xf32>
    %109 = arith.addf %106, %108 : vector<1x64xf32>
    %110 = arith.addf %99, %109 : vector<1x64xf32>
    %cst_49 = arith.constant 0.606530666 : f32
    %111 = vector.broadcast %cst_49 : f32 to vector<1x64xf32>
    %112 = arith.mulf %111, %110 : vector<1x64xf32>
    %113 = vector.extract_strided_slice %16 {offsets = [7, 0], sizes = [1, 64], strides = [1, 1]} : vector<16x64xf32> to vector<1x64xf32>
    %114 = arith.cmpf oge, %112, %113 : vector<1x64xf32>
    %115 = arith.extui %114 : vector<1x64xi1> to vector<1x64xi32>
    %116 = arith.sitofp %115 : vector<1x64xi32> to vector<1x64xf32>
    %c7 = arith.constant 7 : index
    %c0_50 = arith.constant 0 : index
    %117 = vector.load %arg10[%c7, %c0_50] : memref<16x64xf32, #tpu.memory_space<vmem>>, vector<1x64xf32>
    tpu.vector_store %arg10[%c7, %c0_50], %116 {strides = array<i32>} : memref<16x64xf32, #tpu.memory_space<vmem>>, vector<1x64xf32>,
    %cst_51 = arith.constant 0.606530666 : f32
    %118 = vector.broadcast %cst_51 : f32 to vector<1x64xf32>
    %119 = arith.mulf %118, %109 : vector<1x64xf32>
    %cst_52 = arith.constant -2.71828175 : f32
    %120 = vector.broadcast %cst_52 : f32 to vector<1x64xf32>
    %121 = arith.mulf %120, %116 : vector<1x64xf32>
    %122 = arith.addf %119, %121 : vector<1x64xf32>
    %123 = arith.addf %112, %122 : vector<1x64xf32>
    %cst_53 = arith.constant 0.606530666 : f32
    %124 = vector.broadcast %cst_53 : f32 to vector<1x64xf32>
    %125 = arith.mulf %124, %123 : vector<1x64xf32>
    %126 = vector.extract_strided_slice %16 {offsets = [8, 0], sizes = [1, 64], strides = [1, 1]} : vector<16x64xf32> to vector<1x64xf32>
    %127 = arith.cmpf oge, %125, %126 : vector<1x64xf32>
    %128 = arith.extui %127 : vector<1x64xi1> to vector<1x64xi32>
    %129 = arith.sitofp %128 : vector<1x64xi32> to vector<1x64xf32>
    %c8 = arith.constant 8 : index
    %c0_54 = arith.constant 0 : index
    %130 = vector.load %arg10[%c8, %c0_54] : memref<16x64xf32, #tpu.memory_space<vmem>>, vector<1x64xf32>
    tpu.vector_store %arg10[%c8, %c0_54], %129 {strides = array<i32>} : memref<16x64xf32, #tpu.memory_space<vmem>>, vector<1x64xf32>,
    %cst_55 = arith.constant 0.606530666 : f32
    %131 = vector.broadcast %cst_55 : f32 to vector<1x64xf32>
    %132 = arith.mulf %131, %122 : vector<1x64xf32>
    %cst_56 = arith.constant -2.71828175 : f32
    %133 = vector.broadcast %cst_56 : f32 to vector<1x64xf32>
    %134 = arith.mulf %133, %129 : vector<1x64xf32>
    %135 = arith.addf %132, %134 : vector<1x64xf32>
    %136 = arith.addf %125, %135 : vector<1x64xf32>
    %cst_57 = arith.constant 0.606530666 : f32
    %137 = vector.broadcast %cst_57 : f32 to vector<1x64xf32>
    %138 = arith.mulf %137, %136 : vector<1x64xf32>
    %139 = vector.extract_strided_slice %16 {offsets = [9, 0], sizes = [1, 64], strides = [1, 1]} : vector<16x64xf32> to vector<1x64xf32>
    %140 = arith.cmpf oge, %138, %139 : vector<1x64xf32>
    %141 = arith.extui %140 : vector<1x64xi1> to vector<1x64xi32>
    %142 = arith.sitofp %141 : vector<1x64xi32> to vector<1x64xf32>
    %c9 = arith.constant 9 : index
    %c0_58 = arith.constant 0 : index
    %143 = vector.load %arg10[%c9, %c0_58] : memref<16x64xf32, #tpu.memory_space<vmem>>, vector<1x64xf32>
    tpu.vector_store %arg10[%c9, %c0_58], %142 {strides = array<i32>} : memref<16x64xf32, #tpu.memory_space<vmem>>, vector<1x64xf32>,
    %cst_59 = arith.constant 0.606530666 : f32
    %144 = vector.broadcast %cst_59 : f32 to vector<1x64xf32>
    %145 = arith.mulf %144, %135 : vector<1x64xf32>
    %cst_60 = arith.constant -2.71828175 : f32
    %146 = vector.broadcast %cst_60 : f32 to vector<1x64xf32>
    %147 = arith.mulf %146, %142 : vector<1x64xf32>
    %148 = arith.addf %145, %147 : vector<1x64xf32>
    %149 = arith.addf %138, %148 : vector<1x64xf32>
    %cst_61 = arith.constant 0.606530666 : f32
    %150 = vector.broadcast %cst_61 : f32 to vector<1x64xf32>
    %151 = arith.mulf %150, %149 : vector<1x64xf32>
    %152 = vector.extract_strided_slice %16 {offsets = [10, 0], sizes = [1, 64], strides = [1, 1]} : vector<16x64xf32> to vector<1x64xf32>
    %153 = arith.cmpf oge, %151, %152 : vector<1x64xf32>
    %154 = arith.extui %153 : vector<1x64xi1> to vector<1x64xi32>
    %155 = arith.sitofp %154 : vector<1x64xi32> to vector<1x64xf32>
    %c10 = arith.constant 10 : index
    %c0_62 = arith.constant 0 : index
    %156 = vector.load %arg10[%c10, %c0_62] : memref<16x64xf32, #tpu.memory_space<vmem>>, vector<1x64xf32>
    tpu.vector_store %arg10[%c10, %c0_62], %155 {strides = array<i32>} : memref<16x64xf32, #tpu.memory_space<vmem>>, vector<1x64xf32>,
    %cst_63 = arith.constant 0.606530666 : f32
    %157 = vector.broadcast %cst_63 : f32 to vector<1x64xf32>
    %158 = arith.mulf %157, %148 : vector<1x64xf32>
    %cst_64 = arith.constant -2.71828175 : f32
    %159 = vector.broadcast %cst_64 : f32 to vector<1x64xf32>
    %160 = arith.mulf %159, %155 : vector<1x64xf32>
    %161 = arith.addf %158, %160 : vector<1x64xf32>
    %162 = arith.addf %151, %161 : vector<1x64xf32>
    %cst_65 = arith.constant 0.606530666 : f32
    %163 = vector.broadcast %cst_65 : f32 to vector<1x64xf32>
    %164 = arith.mulf %163, %162 : vector<1x64xf32>
    %165 = vector.extract_strided_slice %16 {offsets = [11, 0], sizes = [1, 64], strides = [1, 1]} : vector<16x64xf32> to vector<1x64xf32>
    %166 = arith.cmpf oge, %164, %165 : vector<1x64xf32>
    %167 = arith.extui %166 : vector<1x64xi1> to vector<1x64xi32>
    %168 = arith.sitofp %167 : vector<1x64xi32> to vector<1x64xf32>
    %c11 = arith.constant 11 : index
    %c0_66 = arith.constant 0 : index
    %169 = vector.load %arg10[%c11, %c0_66] : memref<16x64xf32, #tpu.memory_space<vmem>>, vector<1x64xf32>
    tpu.vector_store %arg10[%c11, %c0_66], %168 {strides = array<i32>} : memref<16x64xf32, #tpu.memory_space<vmem>>, vector<1x64xf32>,
    %cst_67 = arith.constant 0.606530666 : f32
    %170 = vector.broadcast %cst_67 : f32 to vector<1x64xf32>
    %171 = arith.mulf %170, %161 : vector<1x64xf32>
    %cst_68 = arith.constant -2.71828175 : f32
    %172 = vector.broadcast %cst_68 : f32 to vector<1x64xf32>
    %173 = arith.mulf %172, %168 : vector<1x64xf32>
    %174 = arith.addf %171, %173 : vector<1x64xf32>
    %175 = arith.addf %164, %174 : vector<1x64xf32>
    %cst_69 = arith.constant 0.606530666 : f32
    %176 = vector.broadcast %cst_69 : f32 to vector<1x64xf32>
    %177 = arith.mulf %176, %175 : vector<1x64xf32>
    %178 = vector.extract_strided_slice %16 {offsets = [12, 0], sizes = [1, 64], strides = [1, 1]} : vector<16x64xf32> to vector<1x64xf32>
    %179 = arith.cmpf oge, %177, %178 : vector<1x64xf32>
    %180 = arith.extui %179 : vector<1x64xi1> to vector<1x64xi32>
    %181 = arith.sitofp %180 : vector<1x64xi32> to vector<1x64xf32>
    %c12 = arith.constant 12 : index
    %c0_70 = arith.constant 0 : index
    %182 = vector.load %arg10[%c12, %c0_70] : memref<16x64xf32, #tpu.memory_space<vmem>>, vector<1x64xf32>
    tpu.vector_store %arg10[%c12, %c0_70], %181 {strides = array<i32>} : memref<16x64xf32, #tpu.memory_space<vmem>>, vector<1x64xf32>,
    %cst_71 = arith.constant 0.606530666 : f32
    %183 = vector.broadcast %cst_71 : f32 to vector<1x64xf32>
    %184 = arith.mulf %183, %174 : vector<1x64xf32>
    %cst_72 = arith.constant -2.71828175 : f32
    %185 = vector.broadcast %cst_72 : f32 to vector<1x64xf32>
    %186 = arith.mulf %185, %181 : vector<1x64xf32>
    %187 = arith.addf %184, %186 : vector<1x64xf32>
    %188 = arith.addf %177, %187 : vector<1x64xf32>
    %cst_73 = arith.constant 0.606530666 : f32
    %189 = vector.broadcast %cst_73 : f32 to vector<1x64xf32>
    %190 = arith.mulf %189, %188 : vector<1x64xf32>
    %191 = vector.extract_strided_slice %16 {offsets = [13, 0], sizes = [1, 64], strides = [1, 1]} : vector<16x64xf32> to vector<1x64xf32>
    %192 = arith.cmpf oge, %190, %191 : vector<1x64xf32>
    %193 = arith.extui %192 : vector<1x64xi1> to vector<1x64xi32>
    %194 = arith.sitofp %193 : vector<1x64xi32> to vector<1x64xf32>
    %c13 = arith.constant 13 : index
    %c0_74 = arith.constant 0 : index
    %195 = vector.load %arg10[%c13, %c0_74] : memref<16x64xf32, #tpu.memory_space<vmem>>, vector<1x64xf32>
    tpu.vector_store %arg10[%c13, %c0_74], %194 {strides = array<i32>} : memref<16x64xf32, #tpu.memory_space<vmem>>, vector<1x64xf32>,
    %cst_75 = arith.constant 0.606530666 : f32
    %196 = vector.broadcast %cst_75 : f32 to vector<1x64xf32>
    %197 = arith.mulf %196, %187 : vector<1x64xf32>
    %cst_76 = arith.constant -2.71828175 : f32
    %198 = vector.broadcast %cst_76 : f32 to vector<1x64xf32>
    %199 = arith.mulf %198, %194 : vector<1x64xf32>
    %200 = arith.addf %197, %199 : vector<1x64xf32>
    %201 = arith.addf %190, %200 : vector<1x64xf32>
    %cst_77 = arith.constant 0.606530666 : f32
    %202 = vector.broadcast %cst_77 : f32 to vector<1x64xf32>
    %203 = arith.mulf %202, %201 : vector<1x64xf32>
    %204 = vector.extract_strided_slice %16 {offsets = [14, 0], sizes = [1, 64], strides = [1, 1]} : vector<16x64xf32> to vector<1x64xf32>
    %205 = arith.cmpf oge, %203, %204 : vector<1x64xf32>
    %206 = arith.extui %205 : vector<1x64xi1> to vector<1x64xi32>
    %207 = arith.sitofp %206 : vector<1x64xi32> to vector<1x64xf32>
    %c14 = arith.constant 14 : index
    %c0_78 = arith.constant 0 : index
    %208 = vector.load %arg10[%c14, %c0_78] : memref<16x64xf32, #tpu.memory_space<vmem>>, vector<1x64xf32>
    tpu.vector_store %arg10[%c14, %c0_78], %207 {strides = array<i32>} : memref<16x64xf32, #tpu.memory_space<vmem>>, vector<1x64xf32>,
    %cst_79 = arith.constant 0.606530666 : f32
    %209 = vector.broadcast %cst_79 : f32 to vector<1x64xf32>
    %210 = arith.mulf %209, %200 : vector<1x64xf32>
    %cst_80 = arith.constant -2.71828175 : f32
    %211 = vector.broadcast %cst_80 : f32 to vector<1x64xf32>
    %212 = arith.mulf %211, %207 : vector<1x64xf32>
    %213 = arith.addf %210, %212 : vector<1x64xf32>
    %214 = arith.addf %203, %213 : vector<1x64xf32>
    %cst_81 = arith.constant 0.606530666 : f32
    %215 = vector.broadcast %cst_81 : f32 to vector<1x64xf32>
    %216 = arith.mulf %215, %214 : vector<1x64xf32>
    %217 = vector.extract_strided_slice %16 {offsets = [15, 0], sizes = [1, 64], strides = [1, 1]} : vector<16x64xf32> to vector<1x64xf32>
    %218 = arith.cmpf oge, %216, %217 : vector<1x64xf32>
    %219 = arith.extui %218 : vector<1x64xi1> to vector<1x64xi32>
    %220 = arith.sitofp %219 : vector<1x64xi32> to vector<1x64xf32>
    %c15 = arith.constant 15 : index
    %c0_82 = arith.constant 0 : index
    %221 = vector.load %arg10[%c15, %c0_82] : memref<16x64xf32, #tpu.memory_space<vmem>>, vector<1x64xf32>
    tpu.vector_store %arg10[%c15, %c0_82], %220 {strides = array<i32>} : memref<16x64xf32, #tpu.memory_space<vmem>>, vector<1x64xf32>,
    %c0_83 = arith.constant 0 : index
    %c0_84 = arith.constant 0 : index
    %222 = vector.load %arg10[%c0_83, %c0_84] : memref<16x64xf32, #tpu.memory_space<vmem>>, vector<16x64xf32>
    %cst_85 = arith.constant dense<0.000000e+00> : vector<16x64xf32>
    %223 = tpu.matmul %0, %222, %cst_85 {dimension_numbers = #tpu.dot_dimension_numbers<[1], [0], [0], [1], [0, 0, 1, 1], [], []>} : vector<16x16xf32>, vector<16x64xf32>, vector<16x64xf32> -> vector<16x64xf32>
    %224 = vector.extract_strided_slice %223 {offsets = [0, 0], sizes = [16, 32], strides = [1, 1]} : vector<16x64xf32> to vector<16x32xf32>
    %cst_86 = arith.constant dense<0.000000e+00> : vector<16x8xf32>
    %225 = tpu.matmul %224, %2, %cst_86 {dimension_numbers = #tpu.dot_dimension_numbers<[1], [0], [0], [1], [0, 0, 1, 1], [], []>} : vector<16x32xf32>, vector<32x8xf32>, vector<16x8xf32> -> vector<16x8xf32>
    %226 = vector.extract_strided_slice %223 {offsets = [0, 32], sizes = [16, 32], strides = [1, 1]} : vector<16x64xf32> to vector<16x32xf32>
    %cst_87 = arith.constant dense<0.000000e+00> : vector<16x8xf32>
    %227 = tpu.matmul %226, %2, %cst_87 {dimension_numbers = #tpu.dot_dimension_numbers<[1], [0], [0], [1], [0, 0, 1, 1], [], []>} : vector<16x32xf32>, vector<32x8xf32>, vector<16x8xf32> -> vector<16x8xf32>
    %228 = tpu.concatenate %225, %227 in 1 : vector<16x8xf32>, vector<16x8xf32> -> vector<16x16xf32>
    %c0_88 = arith.constant 0 : index
    %c0_89 = arith.constant 0 : index
    %c0_90 = arith.constant 0 : index
    %229 = vector.load %arg9[%c0_88, %c0_89, %c0_90] : memref<1x16x16xf32, #tpu.memory_space<vmem>>, vector<1x16x16xf32>
    %230 = vector.shape_cast %229 : vector<1x16x16xf32> to vector<16x16xf32>
    %231 = vector.shape_cast %228 : vector<16x16xf32> to vector<1x16x16xf32>
    tpu.vector_store %arg9[%c0_88, %c0_89, %c0_90], %231 {strides = array<i32>} : memref<1x16x16xf32, #tpu.memory_space<vmem>>, vector<1x16x16xf32>,
    %232 = vector.extract_strided_slice %228 {offsets = [0, 0], sizes = [16, 4], strides = [1, 1]} : vector<16x16xf32> to vector<16x4xf32>
    %233 = vector.extract_strided_slice %228 {offsets = [0, 4], sizes = [16, 4], strides = [1, 1]} : vector<16x16xf32> to vector<16x4xf32>
    %234 = vector.extract_strided_slice %6 {offsets = [0, 0], sizes = [1, 4], strides = [1, 1]} : vector<1x8xf32> to vector<1x4xf32>
    %cst_91 = arith.constant 5.000000e-01 : f32
    %235 = vector.broadcast %cst_91 : f32 to vector<16x4xf32>
    %236 = arith.mulf %235, %233 : vector<16x4xf32>
    %237 = math.exp %236 : vector<16x4xf32>
    %238 = vector.broadcast %234 : vector<1x4xf32> to vector<16x4xf32>
    %239 = arith.mulf %238, %237 : vector<16x4xf32>
    %240 = arith.addf %239, %232 : vector<16x4xf32>
    %241 = vector.extract_strided_slice %228 {offsets = [0, 8], sizes = [16, 4], strides = [1, 1]} : vector<16x16xf32> to vector<16x4xf32>
    %242 = vector.extract_strided_slice %228 {offsets = [0, 12], sizes = [16, 4], strides = [1, 1]} : vector<16x16xf32> to vector<16x4xf32>
    %243 = vector.extract_strided_slice %6 {offsets = [0, 4], sizes = [1, 4], strides = [1, 1]} : vector<1x8xf32> to vector<1x4xf32>
    %cst_92 = arith.constant 5.000000e-01 : f32
    %244 = vector.broadcast %cst_92 : f32 to vector<16x4xf32>
    %245 = arith.mulf %244, %242 : vector<16x4xf32>
    %246 = math.exp %245 : vector<16x4xf32>
    %247 = vector.broadcast %243 : vector<1x4xf32> to vector<16x4xf32>
    %248 = arith.mulf %247, %246 : vector<16x4xf32>
    %249 = arith.addf %248, %241 : vector<16x4xf32>
    %250 = tpu.concatenate %240, %249 in 1 : vector<16x4xf32>, vector<16x4xf32> -> vector<16x8xf32>
    %cst_93 = arith.constant dense<0.000000e+00> : vector<16x8xf32>
    %251 = tpu.matmul %0, %250, %cst_93 {dimension_numbers = #tpu.dot_dimension_numbers<[1], [0], [0], [1], [0, 0, 1, 1], [], []>} : vector<16x16xf32>, vector<16x8xf32>, vector<16x8xf32> -> vector<16x8xf32>
    %252 = vector.extract_strided_slice %251 {offsets = [0, 0], sizes = [16, 4], strides = [1, 1]} : vector<16x8xf32> to vector<16x4xf32>
    %cst_94 = arith.constant dense<0.000000e+00> : vector<16x32xf32>
    %253 = tpu.matmul %252, %3, %cst_94 {dimension_numbers = #tpu.dot_dimension_numbers<[1], [0], [0], [1], [0, 0, 1, 1], [], []>} : vector<16x4xf32>, vector<4x32xf32>, vector<16x32xf32> -> vector<16x32xf32>
    %254 = vector.extract_strided_slice %251 {offsets = [0, 4], sizes = [16, 4], strides = [1, 1]} : vector<16x8xf32> to vector<16x4xf32>
    %cst_95 = arith.constant dense<0.000000e+00> : vector<16x32xf32>
    %255 = tpu.matmul %254, %3, %cst_95 {dimension_numbers = #tpu.dot_dimension_numbers<[1], [0], [0], [1], [0, 0, 1, 1], [], []>} : vector<16x4xf32>, vector<4x32xf32>, vector<16x32xf32> -> vector<16x32xf32>
    %256 = tpu.concatenate %253, %255 in 1 : vector<16x32xf32>, vector<16x32xf32> -> vector<16x64xf32>
    %cst_96 = arith.constant 1.000000e+00 : f32
    %257 = vector.broadcast %cst_96 : f32 to vector<16x64xf32>
    %258 = arith.subf %257, %256 : vector<16x64xf32>
    %cst_97 = arith.constant 0.000000e+00 : f32
    %259 = vector.broadcast %cst_97 : f32 to vector<1x64xf32>
    %cst_98 = arith.constant 0.000000e+00 : f32
    %260 = vector.broadcast %cst_98 : f32 to vector<1x64xf32>
    %261 = arith.addf %259, %260 : vector<1x64xf32>
    %cst_99 = arith.constant 0.606530666 : f32
    %262 = vector.broadcast %cst_99 : f32 to vector<1x64xf32>
    %263 = arith.mulf %262, %261 : vector<1x64xf32>
    %264 = vector.extract_strided_slice %258 {offsets = [0, 0], sizes = [1, 64], strides = [1, 1]} : vector<16x64xf32> to vector<1x64xf32>
    %265 = arith.cmpf oge, %263, %264 : vector<1x64xf32>
    %266 = arith.extui %265 : vector<1x64xi1> to vector<1x64xi32>
    %267 = arith.sitofp %266 : vector<1x64xi32> to vector<1x64xf32>
    %c0_100 = arith.constant 0 : index
    %c0_101 = arith.constant 0 : index
    %268 = vector.load %arg10[%c0_100, %c0_101] : memref<16x64xf32, #tpu.memory_space<vmem>>, vector<1x64xf32>
    tpu.vector_store %arg10[%c0_100, %c0_101], %267 {strides = array<i32>} : memref<16x64xf32, #tpu.memory_space<vmem>>, vector<1x64xf32>,
    %cst_102 = arith.constant 0.606530666 : f32
    %269 = vector.broadcast %cst_102 : f32 to vector<1x64xf32>
    %270 = arith.mulf %269, %260 : vector<1x64xf32>
    %cst_103 = arith.constant -2.71828175 : f32
    %271 = vector.broadcast %cst_103 : f32 to vector<1x64xf32>
    %272 = arith.mulf %271, %267 : vector<1x64xf32>
    %273 = arith.addf %270, %272 : vector<1x64xf32>
    %274 = arith.addf %263, %273 : vector<1x64xf32>
    %cst_104 = arith.constant 0.606530666 : f32
    %275 = vector.broadcast %cst_104 : f32 to vector<1x64xf32>
    %276 = arith.mulf %275, %274 : vector<1x64xf32>
    %277 = vector.extract_strided_slice %258 {offsets = [1, 0], sizes = [1, 64], strides = [1, 1]} : vector<16x64xf32> to vector<1x64xf32>
    %278 = arith.cmpf oge, %276, %277 : vector<1x64xf32>
    %279 = arith.extui %278 : vector<1x64xi1> to vector<1x64xi32>
    %280 = arith.sitofp %279 : vector<1x64xi32> to vector<1x64xf32>
    %c1_105 = arith.constant 1 : index
    %c0_106 = arith.constant 0 : index
    %281 = vector.load %arg10[%c1_105, %c0_106] : memref<16x64xf32, #tpu.memory_space<vmem>>, vector<1x64xf32>
    tpu.vector_store %arg10[%c1_105, %c0_106], %280 {strides = array<i32>} : memref<16x64xf32, #tpu.memory_space<vmem>>, vector<1x64xf32>,
    %cst_107 = arith.constant 0.606530666 : f32
    %282 = vector.broadcast %cst_107 : f32 to vector<1x64xf32>
    %283 = arith.mulf %282, %273 : vector<1x64xf32>
    %cst_108 = arith.constant -2.71828175 : f32
    %284 = vector.broadcast %cst_108 : f32 to vector<1x64xf32>
    %285 = arith.mulf %284, %280 : vector<1x64xf32>
    %286 = arith.addf %283, %285 : vector<1x64xf32>
    %287 = arith.addf %276, %286 : vector<1x64xf32>
    %cst_109 = arith.constant 0.606530666 : f32
    %288 = vector.broadcast %cst_109 : f32 to vector<1x64xf32>
    %289 = arith.mulf %288, %287 : vector<1x64xf32>
    %290 = vector.extract_strided_slice %258 {offsets = [2, 0], sizes = [1, 64], strides = [1, 1]} : vector<16x64xf32> to vector<1x64xf32>
    %291 = arith.cmpf oge, %289, %290 : vector<1x64xf32>
    %292 = arith.extui %291 : vector<1x64xi1> to vector<1x64xi32>
    %293 = arith.sitofp %292 : vector<1x64xi32> to vector<1x64xf32>
    %c2_110 = arith.constant 2 : index
    %c0_111 = arith.constant 0 : index
    %294 = vector.load %arg10[%c2_110, %c0_111] : memref<16x64xf32, #tpu.memory_space<vmem>>, vector<1x64xf32>
    tpu.vector_store %arg10[%c2_110, %c0_111], %293 {strides = array<i32>} : memref<16x64xf32, #tpu.memory_space<vmem>>, vector<1x64xf32>,
    %cst_112 = arith.constant 0.606530666 : f32
    %295 = vector.broadcast %cst_112 : f32 to vector<1x64xf32>
    %296 = arith.mulf %295, %286 : vector<1x64xf32>
    %cst_113 = arith.constant -2.71828175 : f32
    %297 = vector.broadcast %cst_113 : f32 to vector<1x64xf32>
    %298 = arith.mulf %297, %293 : vector<1x64xf32>
    %299 = arith.addf %296, %298 : vector<1x64xf32>
    %300 = arith.addf %289, %299 : vector<1x64xf32>
    %cst_114 = arith.constant 0.606530666 : f32
    %301 = vector.broadcast %cst_114 : f32 to vector<1x64xf32>
    %302 = arith.mulf %301, %300 : vector<1x64xf32>
    %303 = vector.extract_strided_slice %258 {offsets = [3, 0], sizes = [1, 64], strides = [1, 1]} : vector<16x64xf32> to vector<1x64xf32>
    %304 = arith.cmpf oge, %302, %303 : vector<1x64xf32>
    %305 = arith.extui %304 : vector<1x64xi1> to vector<1x64xi32>
    %306 = arith.sitofp %305 : vector<1x64xi32> to vector<1x64xf32>
    %c3_115 = arith.constant 3 : index
    %c0_116 = arith.constant 0 : index
    %307 = vector.load %arg10[%c3_115, %c0_116] : memref<16x64xf32, #tpu.memory_space<vmem>>, vector<1x64xf32>
    tpu.vector_store %arg10[%c3_115, %c0_116], %306 {strides = array<i32>} : memref<16x64xf32, #tpu.memory_space<vmem>>, vector<1x64xf32>,
    %cst_117 = arith.constant 0.606530666 : f32
    %308 = vector.broadcast %cst_117 : f32 to vector<1x64xf32>
    %309 = arith.mulf %308, %299 : vector<1x64xf32>
    %cst_118 = arith.constant -2.71828175 : f32
    %310 = vector.broadcast %cst_118 : f32 to vector<1x64xf32>
    %311 = arith.mulf %310, %306 : vector<1x64xf32>
    %312 = arith.addf %309, %311 : vector<1x64xf32>
    %313 = arith.addf %302, %312 : vector<1x64xf32>
    %cst_119 = arith.constant 0.606530666 : f32
    %314 = vector.broadcast %cst_119 : f32 to vector<1x64xf32>
    %315 = arith.mulf %314, %313 : vector<1x64xf32>
    %316 = vector.extract_strided_slice %258 {offsets = [4, 0], sizes = [1, 64], strides = [1, 1]} : vector<16x64xf32> to vector<1x64xf32>
    %317 = arith.cmpf oge, %315, %316 : vector<1x64xf32>
    %318 = arith.extui %317 : vector<1x64xi1> to vector<1x64xi32>
    %319 = arith.sitofp %318 : vector<1x64xi32> to vector<1x64xf32>
    %c4_120 = arith.constant 4 : index
    %c0_121 = arith.constant 0 : index
    %320 = vector.load %arg10[%c4_120, %c0_121] : memref<16x64xf32, #tpu.memory_space<vmem>>, vector<1x64xf32>
    tpu.vector_store %arg10[%c4_120, %c0_121], %319 {strides = array<i32>} : memref<16x64xf32, #tpu.memory_space<vmem>>, vector<1x64xf32>,
    %cst_122 = arith.constant 0.606530666 : f32
    %321 = vector.broadcast %cst_122 : f32 to vector<1x64xf32>
    %322 = arith.mulf %321, %312 : vector<1x64xf32>
    %cst_123 = arith.constant -2.71828175 : f32
    %323 = vector.broadcast %cst_123 : f32 to vector<1x64xf32>
    %324 = arith.mulf %323, %319 : vector<1x64xf32>
    %325 = arith.addf %322, %324 : vector<1x64xf32>
    %326 = arith.addf %315, %325 : vector<1x64xf32>
    %cst_124 = arith.constant 0.606530666 : f32
    %327 = vector.broadcast %cst_124 : f32 to vector<1x64xf32>
    %328 = arith.mulf %327, %326 : vector<1x64xf32>
    %329 = vector.extract_strided_slice %258 {offsets = [5, 0], sizes = [1, 64], strides = [1, 1]} : vector<16x64xf32> to vector<1x64xf32>
    %330 = arith.cmpf oge, %328, %329 : vector<1x64xf32>
    %331 = arith.extui %330 : vector<1x64xi1> to vector<1x64xi32>
    %332 = arith.sitofp %331 : vector<1x64xi32> to vector<1x64xf32>
    %c5_125 = arith.constant 5 : index
    %c0_126 = arith.constant 0 : index
    %333 = vector.load %arg10[%c5_125, %c0_126] : memref<16x64xf32, #tpu.memory_space<vmem>>, vector<1x64xf32>
    tpu.vector_store %arg10[%c5_125, %c0_126], %332 {strides = array<i32>} : memref<16x64xf32, #tpu.memory_space<vmem>>, vector<1x64xf32>,
    %cst_127 = arith.constant 0.606530666 : f32
    %334 = vector.broadcast %cst_127 : f32 to vector<1x64xf32>
    %335 = arith.mulf %334, %325 : vector<1x64xf32>
    %cst_128 = arith.constant -2.71828175 : f32
    %336 = vector.broadcast %cst_128 : f32 to vector<1x64xf32>
    %337 = arith.mulf %336, %332 : vector<1x64xf32>
    %338 = arith.addf %335, %337 : vector<1x64xf32>
    %339 = arith.addf %328, %338 : vector<1x64xf32>
    %cst_129 = arith.constant 0.606530666 : f32
    %340 = vector.broadcast %cst_129 : f32 to vector<1x64xf32>
    %341 = arith.mulf %340, %339 : vector<1x64xf32>
    %342 = vector.extract_strided_slice %258 {offsets = [6, 0], sizes = [1, 64], strides = [1, 1]} : vector<16x64xf32> to vector<1x64xf32>
    %343 = arith.cmpf oge, %341, %342 : vector<1x64xf32>
    %344 = arith.extui %343 : vector<1x64xi1> to vector<1x64xi32>
    %345 = arith.sitofp %344 : vector<1x64xi32> to vector<1x64xf32>
    %c6_130 = arith.constant 6 : index
    %c0_131 = arith.constant 0 : index
    %346 = vector.load %arg10[%c6_130, %c0_131] : memref<16x64xf32, #tpu.memory_space<vmem>>, vector<1x64xf32>
    tpu.vector_store %arg10[%c6_130, %c0_131], %345 {strides = array<i32>} : memref<16x64xf32, #tpu.memory_space<vmem>>, vector<1x64xf32>,
    %cst_132 = arith.constant 0.606530666 : f32
    %347 = vector.broadcast %cst_132 : f32 to vector<1x64xf32>
    %348 = arith.mulf %347, %338 : vector<1x64xf32>
    %cst_133 = arith.constant -2.71828175 : f32
    %349 = vector.broadcast %cst_133 : f32 to vector<1x64xf32>
    %350 = arith.mulf %349, %345 : vector<1x64xf32>
    %351 = arith.addf %348, %350 : vector<1x64xf32>
    %352 = arith.addf %341, %351 : vector<1x64xf32>
    %cst_134 = arith.constant 0.606530666 : f32
    %353 = vector.broadcast %cst_134 : f32 to vector<1x64xf32>
    %354 = arith.mulf %353, %352 : vector<1x64xf32>
    %355 = vector.extract_strided_slice %258 {offsets = [7, 0], sizes = [1, 64], strides = [1, 1]} : vector<16x64xf32> to vector<1x64xf32>
    %356 = arith.cmpf oge, %354, %355 : vector<1x64xf32>
    %357 = arith.extui %356 : vector<1x64xi1> to vector<1x64xi32>
    %358 = arith.sitofp %357 : vector<1x64xi32> to vector<1x64xf32>
    %c7_135 = arith.constant 7 : index
    %c0_136 = arith.constant 0 : index
    %359 = vector.load %arg10[%c7_135, %c0_136] : memref<16x64xf32, #tpu.memory_space<vmem>>, vector<1x64xf32>
    tpu.vector_store %arg10[%c7_135, %c0_136], %358 {strides = array<i32>} : memref<16x64xf32, #tpu.memory_space<vmem>>, vector<1x64xf32>,
    %cst_137 = arith.constant 0.606530666 : f32
    %360 = vector.broadcast %cst_137 : f32 to vector<1x64xf32>
    %361 = arith.mulf %360, %351 : vector<1x64xf32>
    %cst_138 = arith.constant -2.71828175 : f32
    %362 = vector.broadcast %cst_138 : f32 to vector<1x64xf32>
    %363 = arith.mulf %362, %358 : vector<1x64xf32>
    %364 = arith.addf %361, %363 : vector<1x64xf32>
    %365 = arith.addf %354, %364 : vector<1x64xf32>
    %cst_139 = arith.constant 0.606530666 : f32
    %366 = vector.broadcast %cst_139 : f32 to vector<1x64xf32>
    %367 = arith.mulf %366, %365 : vector<1x64xf32>
    %368 = vector.extract_strided_slice %258 {offsets = [8, 0], sizes = [1, 64], strides = [1, 1]} : vector<16x64xf32> to vector<1x64xf32>
    %369 = arith.cmpf oge, %367, %368 : vector<1x64xf32>
    %370 = arith.extui %369 : vector<1x64xi1> to vector<1x64xi32>
    %371 = arith.sitofp %370 : vector<1x64xi32> to vector<1x64xf32>
    %c8_140 = arith.constant 8 : index
    %c0_141 = arith.constant 0 : index
    %372 = vector.load %arg10[%c8_140, %c0_141] : memref<16x64xf32, #tpu.memory_space<vmem>>, vector<1x64xf32>
    tpu.vector_store %arg10[%c8_140, %c0_141], %371 {strides = array<i32>} : memref<16x64xf32, #tpu.memory_space<vmem>>, vector<1x64xf32>,
    %cst_142 = arith.constant 0.606530666 : f32
    %373 = vector.broadcast %cst_142 : f32 to vector<1x64xf32>
    %374 = arith.mulf %373, %364 : vector<1x64xf32>
    %cst_143 = arith.constant -2.71828175 : f32
    %375 = vector.broadcast %cst_143 : f32 to vector<1x64xf32>
    %376 = arith.mulf %375, %371 : vector<1x64xf32>
    %377 = arith.addf %374, %376 : vector<1x64xf32>
    %378 = arith.addf %367, %377 : vector<1x64xf32>
    %cst_144 = arith.constant 0.606530666 : f32
    %379 = vector.broadcast %cst_144 : f32 to vector<1x64xf32>
    %380 = arith.mulf %379, %378 : vector<1x64xf32>
    %381 = vector.extract_strided_slice %258 {offsets = [9, 0], sizes = [1, 64], strides = [1, 1]} : vector<16x64xf32> to vector<1x64xf32>
    %382 = arith.cmpf oge, %380, %381 : vector<1x64xf32>
    %383 = arith.extui %382 : vector<1x64xi1> to vector<1x64xi32>
    %384 = arith.sitofp %383 : vector<1x64xi32> to vector<1x64xf32>
    %c9_145 = arith.constant 9 : index
    %c0_146 = arith.constant 0 : index
    %385 = vector.load %arg10[%c9_145, %c0_146] : memref<16x64xf32, #tpu.memory_space<vmem>>, vector<1x64xf32>
    tpu.vector_store %arg10[%c9_145, %c0_146], %384 {strides = array<i32>} : memref<16x64xf32, #tpu.memory_space<vmem>>, vector<1x64xf32>,
    %cst_147 = arith.constant 0.606530666 : f32
    %386 = vector.broadcast %cst_147 : f32 to vector<1x64xf32>
    %387 = arith.mulf %386, %377 : vector<1x64xf32>
    %cst_148 = arith.constant -2.71828175 : f32
    %388 = vector.broadcast %cst_148 : f32 to vector<1x64xf32>
    %389 = arith.mulf %388, %384 : vector<1x64xf32>
    %390 = arith.addf %387, %389 : vector<1x64xf32>
    %391 = arith.addf %380, %390 : vector<1x64xf32>
    %cst_149 = arith.constant 0.606530666 : f32
    %392 = vector.broadcast %cst_149 : f32 to vector<1x64xf32>
    %393 = arith.mulf %392, %391 : vector<1x64xf32>
    %394 = vector.extract_strided_slice %258 {offsets = [10, 0], sizes = [1, 64], strides = [1, 1]} : vector<16x64xf32> to vector<1x64xf32>
    %395 = arith.cmpf oge, %393, %394 : vector<1x64xf32>
    %396 = arith.extui %395 : vector<1x64xi1> to vector<1x64xi32>
    %397 = arith.sitofp %396 : vector<1x64xi32> to vector<1x64xf32>
    %c10_150 = arith.constant 10 : index
    %c0_151 = arith.constant 0 : index
    %398 = vector.load %arg10[%c10_150, %c0_151] : memref<16x64xf32, #tpu.memory_space<vmem>>, vector<1x64xf32>
    tpu.vector_store %arg10[%c10_150, %c0_151], %397 {strides = array<i32>} : memref<16x64xf32, #tpu.memory_space<vmem>>, vector<1x64xf32>,
    %cst_152 = arith.constant 0.606530666 : f32
    %399 = vector.broadcast %cst_152 : f32 to vector<1x64xf32>
    %400 = arith.mulf %399, %390 : vector<1x64xf32>
    %cst_153 = arith.constant -2.71828175 : f32
    %401 = vector.broadcast %cst_153 : f32 to vector<1x64xf32>
    %402 = arith.mulf %401, %397 : vector<1x64xf32>
    %403 = arith.addf %400, %402 : vector<1x64xf32>
    %404 = arith.addf %393, %403 : vector<1x64xf32>
    %cst_154 = arith.constant 0.606530666 : f32
    %405 = vector.broadcast %cst_154 : f32 to vector<1x64xf32>
    %406 = arith.mulf %405, %404 : vector<1x64xf32>
    %407 = vector.extract_strided_slice %258 {offsets = [11, 0], sizes = [1, 64], strides = [1, 1]} : vector<16x64xf32> to vector<1x64xf32>
    %408 = arith.cmpf oge, %406, %407 : vector<1x64xf32>
    %409 = arith.extui %408 : vector<1x64xi1> to vector<1x64xi32>
    %410 = arith.sitofp %409 : vector<1x64xi32> to vector<1x64xf32>
    %c11_155 = arith.constant 11 : index
    %c0_156 = arith.constant 0 : index
    %411 = vector.load %arg10[%c11_155, %c0_156] : memref<16x64xf32, #tpu.memory_space<vmem>>, vector<1x64xf32>
    tpu.vector_store %arg10[%c11_155, %c0_156], %410 {strides = array<i32>} : memref<16x64xf32, #tpu.memory_space<vmem>>, vector<1x64xf32>,
    %cst_157 = arith.constant 0.606530666 : f32
    %412 = vector.broadcast %cst_157 : f32 to vector<1x64xf32>
    %413 = arith.mulf %412, %403 : vector<1x64xf32>
    %cst_158 = arith.constant -2.71828175 : f32
    %414 = vector.broadcast %cst_158 : f32 to vector<1x64xf32>
    %415 = arith.mulf %414, %410 : vector<1x64xf32>
    %416 = arith.addf %413, %415 : vector<1x64xf32>
    %417 = arith.addf %406, %416 : vector<1x64xf32>
    %cst_159 = arith.constant 0.606530666 : f32
    %418 = vector.broadcast %cst_159 : f32 to vector<1x64xf32>
    %419 = arith.mulf %418, %417 : vector<1x64xf32>
    %420 = vector.extract_strided_slice %258 {offsets = [12, 0], sizes = [1, 64], strides = [1, 1]} : vector<16x64xf32> to vector<1x64xf32>
    %421 = arith.cmpf oge, %419, %420 : vector<1x64xf32>
    %422 = arith.extui %421 : vector<1x64xi1> to vector<1x64xi32>
    %423 = arith.sitofp %422 : vector<1x64xi32> to vector<1x64xf32>
    %c12_160 = arith.constant 12 : index
    %c0_161 = arith.constant 0 : index
    %424 = vector.load %arg10[%c12_160, %c0_161] : memref<16x64xf32, #tpu.memory_space<vmem>>, vector<1x64xf32>
    tpu.vector_store %arg10[%c12_160, %c0_161], %423 {strides = array<i32>} : memref<16x64xf32, #tpu.memory_space<vmem>>, vector<1x64xf32>,
    %cst_162 = arith.constant 0.606530666 : f32
    %425 = vector.broadcast %cst_162 : f32 to vector<1x64xf32>
    %426 = arith.mulf %425, %416 : vector<1x64xf32>
    %cst_163 = arith.constant -2.71828175 : f32
    %427 = vector.broadcast %cst_163 : f32 to vector<1x64xf32>
    %428 = arith.mulf %427, %423 : vector<1x64xf32>
    %429 = arith.addf %426, %428 : vector<1x64xf32>
    %430 = arith.addf %419, %429 : vector<1x64xf32>
    %cst_164 = arith.constant 0.606530666 : f32
    %431 = vector.broadcast %cst_164 : f32 to vector<1x64xf32>
    %432 = arith.mulf %431, %430 : vector<1x64xf32>
    %433 = vector.extract_strided_slice %258 {offsets = [13, 0], sizes = [1, 64], strides = [1, 1]} : vector<16x64xf32> to vector<1x64xf32>
    %434 = arith.cmpf oge, %432, %433 : vector<1x64xf32>
    %435 = arith.extui %434 : vector<1x64xi1> to vector<1x64xi32>
    %436 = arith.sitofp %435 : vector<1x64xi32> to vector<1x64xf32>
    %c13_165 = arith.constant 13 : index
    %c0_166 = arith.constant 0 : index
    %437 = vector.load %arg10[%c13_165, %c0_166] : memref<16x64xf32, #tpu.memory_space<vmem>>, vector<1x64xf32>
    tpu.vector_store %arg10[%c13_165, %c0_166], %436 {strides = array<i32>} : memref<16x64xf32, #tpu.memory_space<vmem>>, vector<1x64xf32>,
    %cst_167 = arith.constant 0.606530666 : f32
    %438 = vector.broadcast %cst_167 : f32 to vector<1x64xf32>
    %439 = arith.mulf %438, %429 : vector<1x64xf32>
    %cst_168 = arith.constant -2.71828175 : f32
    %440 = vector.broadcast %cst_168 : f32 to vector<1x64xf32>
    %441 = arith.mulf %440, %436 : vector<1x64xf32>
    %442 = arith.addf %439, %441 : vector<1x64xf32>
    %443 = arith.addf %432, %442 : vector<1x64xf32>
    %cst_169 = arith.constant 0.606530666 : f32
    %444 = vector.broadcast %cst_169 : f32 to vector<1x64xf32>
    %445 = arith.mulf %444, %443 : vector<1x64xf32>
    %446 = vector.extract_strided_slice %258 {offsets = [14, 0], sizes = [1, 64], strides = [1, 1]} : vector<16x64xf32> to vector<1x64xf32>
    %447 = arith.cmpf oge, %445, %446 : vector<1x64xf32>
    %448 = arith.extui %447 : vector<1x64xi1> to vector<1x64xi32>
    %449 = arith.sitofp %448 : vector<1x64xi32> to vector<1x64xf32>
    %c14_170 = arith.constant 14 : index
    %c0_171 = arith.constant 0 : index
    %450 = vector.load %arg10[%c14_170, %c0_171] : memref<16x64xf32, #tpu.memory_space<vmem>>, vector<1x64xf32>
    tpu.vector_store %arg10[%c14_170, %c0_171], %449 {strides = array<i32>} : memref<16x64xf32, #tpu.memory_space<vmem>>, vector<1x64xf32>,
    %cst_172 = arith.constant 0.606530666 : f32
    %451 = vector.broadcast %cst_172 : f32 to vector<1x64xf32>
    %452 = arith.mulf %451, %442 : vector<1x64xf32>
    %cst_173 = arith.constant -2.71828175 : f32
    %453 = vector.broadcast %cst_173 : f32 to vector<1x64xf32>
    %454 = arith.mulf %453, %449 : vector<1x64xf32>
    %455 = arith.addf %452, %454 : vector<1x64xf32>
    %456 = arith.addf %445, %455 : vector<1x64xf32>
    %cst_174 = arith.constant 0.606530666 : f32
    %457 = vector.broadcast %cst_174 : f32 to vector<1x64xf32>
    %458 = arith.mulf %457, %456 : vector<1x64xf32>
    %459 = vector.extract_strided_slice %258 {offsets = [15, 0], sizes = [1, 64], strides = [1, 1]} : vector<16x64xf32> to vector<1x64xf32>
    %460 = arith.cmpf oge, %458, %459 : vector<1x64xf32>
    %461 = arith.extui %460 : vector<1x64xi1> to vector<1x64xi32>
    %462 = arith.sitofp %461 : vector<1x64xi32> to vector<1x64xf32>
    %c15_175 = arith.constant 15 : index
    %c0_176 = arith.constant 0 : index
    %463 = vector.load %arg10[%c15_175, %c0_176] : memref<16x64xf32, #tpu.memory_space<vmem>>, vector<1x64xf32>
    tpu.vector_store %arg10[%c15_175, %c0_176], %462 {strides = array<i32>} : memref<16x64xf32, #tpu.memory_space<vmem>>, vector<1x64xf32>,
    %c0_177 = arith.constant 0 : index
    %c0_178 = arith.constant 0 : index
    %464 = vector.load %arg10[%c0_177, %c0_178] : memref<16x64xf32, #tpu.memory_space<vmem>>, vector<16x64xf32>
    %cst_179 = arith.constant dense<0.000000e+00> : vector<16x64xf32>
    %465 = tpu.matmul %0, %464, %cst_179 {dimension_numbers = #tpu.dot_dimension_numbers<[1], [0], [0], [1], [0, 0, 1, 1], [], []>} : vector<16x16xf32>, vector<16x64xf32>, vector<16x64xf32> -> vector<16x64xf32>
    %466 = vector.extract_strided_slice %465 {offsets = [0, 0], sizes = [16, 32], strides = [1, 1]} : vector<16x64xf32> to vector<16x32xf32>
    %cst_180 = arith.constant dense<0.000000e+00> : vector<16x16xf32>
    %467 = tpu.matmul %466, %4, %cst_180 {dimension_numbers = #tpu.dot_dimension_numbers<[1], [0], [0], [1], [0, 0, 1, 1], [], []>} : vector<16x32xf32>, vector<32x16xf32>, vector<16x16xf32> -> vector<16x16xf32>
    %468 = vector.extract_strided_slice %465 {offsets = [0, 32], sizes = [16, 32], strides = [1, 1]} : vector<16x64xf32> to vector<16x32xf32>
    %cst_181 = arith.constant dense<0.000000e+00> : vector<16x16xf32>
    %469 = tpu.matmul %468, %4, %cst_181 {dimension_numbers = #tpu.dot_dimension_numbers<[1], [0], [0], [1], [0, 0, 1, 1], [], []>} : vector<16x32xf32>, vector<32x16xf32>, vector<16x16xf32> -> vector<16x16xf32>
    %470 = tpu.concatenate %467, %469 in 1 : vector<16x16xf32>, vector<16x16xf32> -> vector<16x32xf32>
    %cst_182 = arith.constant 1.000000e+00 : f32
    %471 = vector.broadcast %cst_182 : f32 to vector<16x32xf32>
    %472 = arith.subf %471, %470 : vector<16x32xf32>
    %cst_183 = arith.constant 0.000000e+00 : f32
    %473 = vector.broadcast %cst_183 : f32 to vector<1x32xf32>
    %cst_184 = arith.constant 0.000000e+00 : f32
    %474 = vector.broadcast %cst_184 : f32 to vector<1x32xf32>
    %475 = arith.addf %473, %474 : vector<1x32xf32>
    %cst_185 = arith.constant 0.606530666 : f32
    %476 = vector.broadcast %cst_185 : f32 to vector<1x32xf32>
    %477 = arith.mulf %476, %475 : vector<1x32xf32>
    %478 = vector.extract_strided_slice %472 {offsets = [0, 0], sizes = [1, 32], strides = [1, 1]} : vector<16x32xf32> to vector<1x32xf32>
    %479 = arith.cmpf oge, %477, %478 : vector<1x32xf32>
    %480 = arith.extui %479 : vector<1x32xi1> to vector<1x32xi32>
    %481 = arith.sitofp %480 : vector<1x32xi32> to vector<1x32xf32>
    %c0_186 = arith.constant 0 : index
    %c0_187 = arith.constant 0 : index
    %c0_188 = arith.constant 0 : index
    %482 = vector.load %arg8[%c0_186, %c0_187, %c0_188] : memref<1x16x32xf32, #tpu.memory_space<vmem>>, vector<1x1x32xf32>
    %483 = vector.shape_cast %482 : vector<1x1x32xf32> to vector<1x32xf32>
    %484 = vector.shape_cast %481 : vector<1x32xf32> to vector<1x1x32xf32>
    tpu.vector_store %arg8[%c0_186, %c0_187, %c0_188], %484 {strides = array<i32>} : memref<1x16x32xf32, #tpu.memory_space<vmem>>, vector<1x1x32xf32>,
    %cst_189 = arith.constant 0.606530666 : f32
    %485 = vector.broadcast %cst_189 : f32 to vector<1x32xf32>
    %486 = arith.mulf %485, %474 : vector<1x32xf32>
    %cst_190 = arith.constant -2.71828175 : f32
    %487 = vector.broadcast %cst_190 : f32 to vector<1x32xf32>
    %488 = arith.mulf %487, %481 : vector<1x32xf32>
    %489 = arith.addf %486, %488 : vector<1x32xf32>
    %490 = arith.addf %477, %489 : vector<1x32xf32>
    %cst_191 = arith.constant 0.606530666 : f32
    %491 = vector.broadcast %cst_191 : f32 to vector<1x32xf32>
    %492 = arith.mulf %491, %490 : vector<1x32xf32>
    %493 = vector.extract_strided_slice %472 {offsets = [1, 0], sizes = [1, 32], strides = [1, 1]} : vector<16x32xf32> to vector<1x32xf32>
    %494 = arith.cmpf oge, %492, %493 : vector<1x32xf32>
    %495 = arith.extui %494 : vector<1x32xi1> to vector<1x32xi32>
    %496 = arith.sitofp %495 : vector<1x32xi32> to vector<1x32xf32>
    %c0_192 = arith.constant 0 : index
    %c1_193 = arith.constant 1 : index
    %c0_194 = arith.constant 0 : index
    %497 = vector.load %arg8[%c0_192, %c1_193, %c0_194] : memref<1x16x32xf32, #tpu.memory_space<vmem>>, vector<1x1x32xf32>
    %498 = vector.shape_cast %497 : vector<1x1x32xf32> to vector<1x32xf32>
    %499 = vector.shape_cast %496 : vector<1x32xf32> to vector<1x1x32xf32>
    tpu.vector_store %arg8[%c0_192, %c1_193, %c0_194], %499 {strides = array<i32>} : memref<1x16x32xf32, #tpu.memory_space<vmem>>, vector<1x1x32xf32>,
    %cst_195 = arith.constant 0.606530666 : f32
    %500 = vector.broadcast %cst_195 : f32 to vector<1x32xf32>
    %501 = arith.mulf %500, %489 : vector<1x32xf32>
    %cst_196 = arith.constant -2.71828175 : f32
    %502 = vector.broadcast %cst_196 : f32 to vector<1x32xf32>
    %503 = arith.mulf %502, %496 : vector<1x32xf32>
    %504 = arith.addf %501, %503 : vector<1x32xf32>
    %505 = arith.addf %492, %504 : vector<1x32xf32>
    %cst_197 = arith.constant 0.606530666 : f32
    %506 = vector.broadcast %cst_197 : f32 to vector<1x32xf32>
    %507 = arith.mulf %506, %505 : vector<1x32xf32>
    %508 = vector.extract_strided_slice %472 {offsets = [2, 0], sizes = [1, 32], strides = [1, 1]} : vector<16x32xf32> to vector<1x32xf32>
    %509 = arith.cmpf oge, %507, %508 : vector<1x32xf32>
    %510 = arith.extui %509 : vector<1x32xi1> to vector<1x32xi32>
    %511 = arith.sitofp %510 : vector<1x32xi32> to vector<1x32xf32>
    %c0_198 = arith.constant 0 : index
    %c2_199 = arith.constant 2 : index
    %c0_200 = arith.constant 0 : index
    %512 = vector.load %arg8[%c0_198, %c2_199, %c0_200] : memref<1x16x32xf32, #tpu.memory_space<vmem>>, vector<1x1x32xf32>
    %513 = vector.shape_cast %512 : vector<1x1x32xf32> to vector<1x32xf32>
    %514 = vector.shape_cast %511 : vector<1x32xf32> to vector<1x1x32xf32>
    tpu.vector_store %arg8[%c0_198, %c2_199, %c0_200], %514 {strides = array<i32>} : memref<1x16x32xf32, #tpu.memory_space<vmem>>, vector<1x1x32xf32>,
    %cst_201 = arith.constant 0.606530666 : f32
    %515 = vector.broadcast %cst_201 : f32 to vector<1x32xf32>
    %516 = arith.mulf %515, %504 : vector<1x32xf32>
    %cst_202 = arith.constant -2.71828175 : f32
    %517 = vector.broadcast %cst_202 : f32 to vector<1x32xf32>
    %518 = arith.mulf %517, %511 : vector<1x32xf32>
    %519 = arith.addf %516, %518 : vector<1x32xf32>
    %520 = arith.addf %507, %519 : vector<1x32xf32>
    %cst_203 = arith.constant 0.606530666 : f32
    %521 = vector.broadcast %cst_203 : f32 to vector<1x32xf32>
    %522 = arith.mulf %521, %520 : vector<1x32xf32>
    %523 = vector.extract_strided_slice %472 {offsets = [3, 0], sizes = [1, 32], strides = [1, 1]} : vector<16x32xf32> to vector<1x32xf32>
    %524 = arith.cmpf oge, %522, %523 : vector<1x32xf32>
    %525 = arith.extui %524 : vector<1x32xi1> to vector<1x32xi32>
    %526 = arith.sitofp %525 : vector<1x32xi32> to vector<1x32xf32>
    %c0_204 = arith.constant 0 : index
    %c3_205 = arith.constant 3 : index
    %c0_206 = arith.constant 0 : index
    %527 = vector.load %arg8[%c0_204, %c3_205, %c0_206] : memref<1x16x32xf32, #tpu.memory_space<vmem>>, vector<1x1x32xf32>
    %528 = vector.shape_cast %527 : vector<1x1x32xf32> to vector<1x32xf32>
    %529 = vector.shape_cast %526 : vector<1x32xf32> to vector<1x1x32xf32>
    tpu.vector_store %arg8[%c0_204, %c3_205, %c0_206], %529 {strides = array<i32>} : memref<1x16x32xf32, #tpu.memory_space<vmem>>, vector<1x1x32xf32>,
    %cst_207 = arith.constant 0.606530666 : f32
    %530 = vector.broadcast %cst_207 : f32 to vector<1x32xf32>
    %531 = arith.mulf %530, %519 : vector<1x32xf32>
    %cst_208 = arith.constant -2.71828175 : f32
    %532 = vector.broadcast %cst_208 : f32 to vector<1x32xf32>
    %533 = arith.mulf %532, %526 : vector<1x32xf32>
    %534 = arith.addf %531, %533 : vector<1x32xf32>
    %535 = arith.addf %522, %534 : vector<1x32xf32>
    %cst_209 = arith.constant 0.606530666 : f32
    %536 = vector.broadcast %cst_209 : f32 to vector<1x32xf32>
    %537 = arith.mulf %536, %535 : vector<1x32xf32>
    %538 = vector.extract_strided_slice %472 {offsets = [4, 0], sizes = [1, 32], strides = [1, 1]} : vector<16x32xf32> to vector<1x32xf32>
    %539 = arith.cmpf oge, %537, %538 : vector<1x32xf32>
    %540 = arith.extui %539 : vector<1x32xi1> to vector<1x32xi32>
    %541 = arith.sitofp %540 : vector<1x32xi32> to vector<1x32xf32>
    %c0_210 = arith.constant 0 : index
    %c4_211 = arith.constant 4 : index
    %c0_212 = arith.constant 0 : index
    %542 = vector.load %arg8[%c0_210, %c4_211, %c0_212] : memref<1x16x32xf32, #tpu.memory_space<vmem>>, vector<1x1x32xf32>
    %543 = vector.shape_cast %542 : vector<1x1x32xf32> to vector<1x32xf32>
    %544 = vector.shape_cast %541 : vector<1x32xf32> to vector<1x1x32xf32>
    tpu.vector_store %arg8[%c0_210, %c4_211, %c0_212], %544 {strides = array<i32>} : memref<1x16x32xf32, #tpu.memory_space<vmem>>, vector<1x1x32xf32>,
    %cst_213 = arith.constant 0.606530666 : f32
    %545 = vector.broadcast %cst_213 : f32 to vector<1x32xf32>
    %546 = arith.mulf %545, %534 : vector<1x32xf32>
    %cst_214 = arith.constant -2.71828175 : f32
    %547 = vector.broadcast %cst_214 : f32 to vector<1x32xf32>
    %548 = arith.mulf %547, %541 : vector<1x32xf32>
    %549 = arith.addf %546, %548 : vector<1x32xf32>
    %550 = arith.addf %537, %549 : vector<1x32xf32>
    %cst_215 = arith.constant 0.606530666 : f32
    %551 = vector.broadcast %cst_215 : f32 to vector<1x32xf32>
    %552 = arith.mulf %551, %550 : vector<1x32xf32>
    %553 = vector.extract_strided_slice %472 {offsets = [5, 0], sizes = [1, 32], strides = [1, 1]} : vector<16x32xf32> to vector<1x32xf32>
    %554 = arith.cmpf oge, %552, %553 : vector<1x32xf32>
    %555 = arith.extui %554 : vector<1x32xi1> to vector<1x32xi32>
    %556 = arith.sitofp %555 : vector<1x32xi32> to vector<1x32xf32>
    %c0_216 = arith.constant 0 : index
    %c5_217 = arith.constant 5 : index
    %c0_218 = arith.constant 0 : index
    %557 = vector.load %arg8[%c0_216, %c5_217, %c0_218] : memref<1x16x32xf32, #tpu.memory_space<vmem>>, vector<1x1x32xf32>
    %558 = vector.shape_cast %557 : vector<1x1x32xf32> to vector<1x32xf32>
    %559 = vector.shape_cast %556 : vector<1x32xf32> to vector<1x1x32xf32>
    tpu.vector_store %arg8[%c0_216, %c5_217, %c0_218], %559 {strides = array<i32>} : memref<1x16x32xf32, #tpu.memory_space<vmem>>, vector<1x1x32xf32>,
    %cst_219 = arith.constant 0.606530666 : f32
    %560 = vector.broadcast %cst_219 : f32 to vector<1x32xf32>
    %561 = arith.mulf %560, %549 : vector<1x32xf32>
    %cst_220 = arith.constant -2.71828175 : f32
    %562 = vector.broadcast %cst_220 : f32 to vector<1x32xf32>
    %563 = arith.mulf %562, %556 : vector<1x32xf32>
    %564 = arith.addf %561, %563 : vector<1x32xf32>
    %565 = arith.addf %552, %564 : vector<1x32xf32>
    %cst_221 = arith.constant 0.606530666 : f32
    %566 = vector.broadcast %cst_221 : f32 to vector<1x32xf32>
    %567 = arith.mulf %566, %565 : vector<1x32xf32>
    %568 = vector.extract_strided_slice %472 {offsets = [6, 0], sizes = [1, 32], strides = [1, 1]} : vector<16x32xf32> to vector<1x32xf32>
    %569 = arith.cmpf oge, %567, %568 : vector<1x32xf32>
    %570 = arith.extui %569 : vector<1x32xi1> to vector<1x32xi32>
    %571 = arith.sitofp %570 : vector<1x32xi32> to vector<1x32xf32>
    %c0_222 = arith.constant 0 : index
    %c6_223 = arith.constant 6 : index
    %c0_224 = arith.constant 0 : index
    %572 = vector.load %arg8[%c0_222, %c6_223, %c0_224] : memref<1x16x32xf32, #tpu.memory_space<vmem>>, vector<1x1x32xf32>
    %573 = vector.shape_cast %572 : vector<1x1x32xf32> to vector<1x32xf32>
    %574 = vector.shape_cast %571 : vector<1x32xf32> to vector<1x1x32xf32>
    tpu.vector_store %arg8[%c0_222, %c6_223, %c0_224], %574 {strides = array<i32>} : memref<1x16x32xf32, #tpu.memory_space<vmem>>, vector<1x1x32xf32>,
    %cst_225 = arith.constant 0.606530666 : f32
    %575 = vector.broadcast %cst_225 : f32 to vector<1x32xf32>
    %576 = arith.mulf %575, %564 : vector<1x32xf32>
    %cst_226 = arith.constant -2.71828175 : f32
    %577 = vector.broadcast %cst_226 : f32 to vector<1x32xf32>
    %578 = arith.mulf %577, %571 : vector<1x32xf32>
    %579 = arith.addf %576, %578 : vector<1x32xf32>
    %580 = arith.addf %567, %579 : vector<1x32xf32>
    %cst_227 = arith.constant 0.606530666 : f32
    %581 = vector.broadcast %cst_227 : f32 to vector<1x32xf32>
    %582 = arith.mulf %581, %580 : vector<1x32xf32>
    %583 = vector.extract_strided_slice %472 {offsets = [7, 0], sizes = [1, 32], strides = [1, 1]} : vector<16x32xf32> to vector<1x32xf32>
    %584 = arith.cmpf oge, %582, %583 : vector<1x32xf32>
    %585 = arith.extui %584 : vector<1x32xi1> to vector<1x32xi32>
    %586 = arith.sitofp %585 : vector<1x32xi32> to vector<1x32xf32>
    %c0_228 = arith.constant 0 : index
    %c7_229 = arith.constant 7 : index
    %c0_230 = arith.constant 0 : index
    %587 = vector.load %arg8[%c0_228, %c7_229, %c0_230] : memref<1x16x32xf32, #tpu.memory_space<vmem>>, vector<1x1x32xf32>
    %588 = vector.shape_cast %587 : vector<1x1x32xf32> to vector<1x32xf32>
    %589 = vector.shape_cast %586 : vector<1x32xf32> to vector<1x1x32xf32>
    tpu.vector_store %arg8[%c0_228, %c7_229, %c0_230], %589 {strides = array<i32>} : memref<1x16x32xf32, #tpu.memory_space<vmem>>, vector<1x1x32xf32>,
    %cst_231 = arith.constant 0.606530666 : f32
    %590 = vector.broadcast %cst_231 : f32 to vector<1x32xf32>
    %591 = arith.mulf %590, %579 : vector<1x32xf32>
    %cst_232 = arith.constant -2.71828175 : f32
    %592 = vector.broadcast %cst_232 : f32 to vector<1x32xf32>
    %593 = arith.mulf %592, %586 : vector<1x32xf32>
    %594 = arith.addf %591, %593 : vector<1x32xf32>
    %595 = arith.addf %582, %594 : vector<1x32xf32>
    %cst_233 = arith.constant 0.606530666 : f32
    %596 = vector.broadcast %cst_233 : f32 to vector<1x32xf32>
    %597 = arith.mulf %596, %595 : vector<1x32xf32>
    %598 = vector.extract_strided_slice %472 {offsets = [8, 0], sizes = [1, 32], strides = [1, 1]} : vector<16x32xf32> to vector<1x32xf32>
    %599 = arith.cmpf oge, %597, %598 : vector<1x32xf32>
    %600 = arith.extui %599 : vector<1x32xi1> to vector<1x32xi32>
    %601 = arith.sitofp %600 : vector<1x32xi32> to vector<1x32xf32>
    %c0_234 = arith.constant 0 : index
    %c8_235 = arith.constant 8 : index
    %c0_236 = arith.constant 0 : index
    %602 = vector.load %arg8[%c0_234, %c8_235, %c0_236] : memref<1x16x32xf32, #tpu.memory_space<vmem>>, vector<1x1x32xf32>
    %603 = vector.shape_cast %602 : vector<1x1x32xf32> to vector<1x32xf32>
    %604 = vector.shape_cast %601 : vector<1x32xf32> to vector<1x1x32xf32>
    tpu.vector_store %arg8[%c0_234, %c8_235, %c0_236], %604 {strides = array<i32>} : memref<1x16x32xf32, #tpu.memory_space<vmem>>, vector<1x1x32xf32>,
    %cst_237 = arith.constant 0.606530666 : f32
    %605 = vector.broadcast %cst_237 : f32 to vector<1x32xf32>
    %606 = arith.mulf %605, %594 : vector<1x32xf32>
    %cst_238 = arith.constant -2.71828175 : f32
    %607 = vector.broadcast %cst_238 : f32 to vector<1x32xf32>
    %608 = arith.mulf %607, %601 : vector<1x32xf32>
    %609 = arith.addf %606, %608 : vector<1x32xf32>
    %610 = arith.addf %597, %609 : vector<1x32xf32>
    %cst_239 = arith.constant 0.606530666 : f32
    %611 = vector.broadcast %cst_239 : f32 to vector<1x32xf32>
    %612 = arith.mulf %611, %610 : vector<1x32xf32>
    %613 = vector.extract_strided_slice %472 {offsets = [9, 0], sizes = [1, 32], strides = [1, 1]} : vector<16x32xf32> to vector<1x32xf32>
    %614 = arith.cmpf oge, %612, %613 : vector<1x32xf32>
    %615 = arith.extui %614 : vector<1x32xi1> to vector<1x32xi32>
    %616 = arith.sitofp %615 : vector<1x32xi32> to vector<1x32xf32>
    %c0_240 = arith.constant 0 : index
    %c9_241 = arith.constant 9 : index
    %c0_242 = arith.constant 0 : index
    %617 = vector.load %arg8[%c0_240, %c9_241, %c0_242] : memref<1x16x32xf32, #tpu.memory_space<vmem>>, vector<1x1x32xf32>
    %618 = vector.shape_cast %617 : vector<1x1x32xf32> to vector<1x32xf32>
    %619 = vector.shape_cast %616 : vector<1x32xf32> to vector<1x1x32xf32>
    tpu.vector_store %arg8[%c0_240, %c9_241, %c0_242], %619 {strides = array<i32>} : memref<1x16x32xf32, #tpu.memory_space<vmem>>, vector<1x1x32xf32>,
    %cst_243 = arith.constant 0.606530666 : f32
    %620 = vector.broadcast %cst_243 : f32 to vector<1x32xf32>
    %621 = arith.mulf %620, %609 : vector<1x32xf32>
    %cst_244 = arith.constant -2.71828175 : f32
    %622 = vector.broadcast %cst_244 : f32 to vector<1x32xf32>
    %623 = arith.mulf %622, %616 : vector<1x32xf32>
    %624 = arith.addf %621, %623 : vector<1x32xf32>
    %625 = arith.addf %612, %624 : vector<1x32xf32>
    %cst_245 = arith.constant 0.606530666 : f32
    %626 = vector.broadcast %cst_245 : f32 to vector<1x32xf32>
    %627 = arith.mulf %626, %625 : vector<1x32xf32>
    %628 = vector.extract_strided_slice %472 {offsets = [10, 0], sizes = [1, 32], strides = [1, 1]} : vector<16x32xf32> to vector<1x32xf32>
    %629 = arith.cmpf oge, %627, %628 : vector<1x32xf32>
    %630 = arith.extui %629 : vector<1x32xi1> to vector<1x32xi32>
    %631 = arith.sitofp %630 : vector<1x32xi32> to vector<1x32xf32>
    %c0_246 = arith.constant 0 : index
    %c10_247 = arith.constant 10 : index
    %c0_248 = arith.constant 0 : index
    %632 = vector.load %arg8[%c0_246, %c10_247, %c0_248] : memref<1x16x32xf32, #tpu.memory_space<vmem>>, vector<1x1x32xf32>
    %633 = vector.shape_cast %632 : vector<1x1x32xf32> to vector<1x32xf32>
    %634 = vector.shape_cast %631 : vector<1x32xf32> to vector<1x1x32xf32>
    tpu.vector_store %arg8[%c0_246, %c10_247, %c0_248], %634 {strides = array<i32>} : memref<1x16x32xf32, #tpu.memory_space<vmem>>, vector<1x1x32xf32>,
    %cst_249 = arith.constant 0.606530666 : f32
    %635 = vector.broadcast %cst_249 : f32 to vector<1x32xf32>
    %636 = arith.mulf %635, %624 : vector<1x32xf32>
    %cst_250 = arith.constant -2.71828175 : f32
    %637 = vector.broadcast %cst_250 : f32 to vector<1x32xf32>
    %638 = arith.mulf %637, %631 : vector<1x32xf32>
    %639 = arith.addf %636, %638 : vector<1x32xf32>
    %640 = arith.addf %627, %639 : vector<1x32xf32>
    %cst_251 = arith.constant 0.606530666 : f32
    %641 = vector.broadcast %cst_251 : f32 to vector<1x32xf32>
    %642 = arith.mulf %641, %640 : vector<1x32xf32>
    %643 = vector.extract_strided_slice %472 {offsets = [11, 0], sizes = [1, 32], strides = [1, 1]} : vector<16x32xf32> to vector<1x32xf32>
    %644 = arith.cmpf oge, %642, %643 : vector<1x32xf32>
    %645 = arith.extui %644 : vector<1x32xi1> to vector<1x32xi32>
    %646 = arith.sitofp %645 : vector<1x32xi32> to vector<1x32xf32>
    %c0_252 = arith.constant 0 : index
    %c11_253 = arith.constant 11 : index
    %c0_254 = arith.constant 0 : index
    %647 = vector.load %arg8[%c0_252, %c11_253, %c0_254] : memref<1x16x32xf32, #tpu.memory_space<vmem>>, vector<1x1x32xf32>
    %648 = vector.shape_cast %647 : vector<1x1x32xf32> to vector<1x32xf32>
    %649 = vector.shape_cast %646 : vector<1x32xf32> to vector<1x1x32xf32>
    tpu.vector_store %arg8[%c0_252, %c11_253, %c0_254], %649 {strides = array<i32>} : memref<1x16x32xf32, #tpu.memory_space<vmem>>, vector<1x1x32xf32>,
    %cst_255 = arith.constant 0.606530666 : f32
    %650 = vector.broadcast %cst_255 : f32 to vector<1x32xf32>
    %651 = arith.mulf %650, %639 : vector<1x32xf32>
    %cst_256 = arith.constant -2.71828175 : f32
    %652 = vector.broadcast %cst_256 : f32 to vector<1x32xf32>
    %653 = arith.mulf %652, %646 : vector<1x32xf32>
    %654 = arith.addf %651, %653 : vector<1x32xf32>
    %655 = arith.addf %642, %654 : vector<1x32xf32>
    %cst_257 = arith.constant 0.606530666 : f32
    %656 = vector.broadcast %cst_257 : f32 to vector<1x32xf32>
    %657 = arith.mulf %656, %655 : vector<1x32xf32>
    %658 = vector.extract_strided_slice %472 {offsets = [12, 0], sizes = [1, 32], strides = [1, 1]} : vector<16x32xf32> to vector<1x32xf32>
    %659 = arith.cmpf oge, %657, %658 : vector<1x32xf32>
    %660 = arith.extui %659 : vector<1x32xi1> to vector<1x32xi32>
    %661 = arith.sitofp %660 : vector<1x32xi32> to vector<1x32xf32>
    %c0_258 = arith.constant 0 : index
    %c12_259 = arith.constant 12 : index
    %c0_260 = arith.constant 0 : index
    %662 = vector.load %arg8[%c0_258, %c12_259, %c0_260] : memref<1x16x32xf32, #tpu.memory_space<vmem>>, vector<1x1x32xf32>
    %663 = vector.shape_cast %662 : vector<1x1x32xf32> to vector<1x32xf32>
    %664 = vector.shape_cast %661 : vector<1x32xf32> to vector<1x1x32xf32>
    tpu.vector_store %arg8[%c0_258, %c12_259, %c0_260], %664 {strides = array<i32>} : memref<1x16x32xf32, #tpu.memory_space<vmem>>, vector<1x1x32xf32>,
    %cst_261 = arith.constant 0.606530666 : f32
    %665 = vector.broadcast %cst_261 : f32 to vector<1x32xf32>
    %666 = arith.mulf %665, %654 : vector<1x32xf32>
    %cst_262 = arith.constant -2.71828175 : f32
    %667 = vector.broadcast %cst_262 : f32 to vector<1x32xf32>
    %668 = arith.mulf %667, %661 : vector<1x32xf32>
    %669 = arith.addf %666, %668 : vector<1x32xf32>
    %670 = arith.addf %657, %669 : vector<1x32xf32>
    %cst_263 = arith.constant 0.606530666 : f32
    %671 = vector.broadcast %cst_263 : f32 to vector<1x32xf32>
    %672 = arith.mulf %671, %670 : vector<1x32xf32>
    %673 = vector.extract_strided_slice %472 {offsets = [13, 0], sizes = [1, 32], strides = [1, 1]} : vector<16x32xf32> to vector<1x32xf32>
    %674 = arith.cmpf oge, %672, %673 : vector<1x32xf32>
    %675 = arith.extui %674 : vector<1x32xi1> to vector<1x32xi32>
    %676 = arith.sitofp %675 : vector<1x32xi32> to vector<1x32xf32>
    %c0_264 = arith.constant 0 : index
    %c13_265 = arith.constant 13 : index
    %c0_266 = arith.constant 0 : index
    %677 = vector.load %arg8[%c0_264, %c13_265, %c0_266] : memref<1x16x32xf32, #tpu.memory_space<vmem>>, vector<1x1x32xf32>
    %678 = vector.shape_cast %677 : vector<1x1x32xf32> to vector<1x32xf32>
    %679 = vector.shape_cast %676 : vector<1x32xf32> to vector<1x1x32xf32>
    tpu.vector_store %arg8[%c0_264, %c13_265, %c0_266], %679 {strides = array<i32>} : memref<1x16x32xf32, #tpu.memory_space<vmem>>, vector<1x1x32xf32>,
    %cst_267 = arith.constant 0.606530666 : f32
    %680 = vector.broadcast %cst_267 : f32 to vector<1x32xf32>
    %681 = arith.mulf %680, %669 : vector<1x32xf32>
    %cst_268 = arith.constant -2.71828175 : f32
    %682 = vector.broadcast %cst_268 : f32 to vector<1x32xf32>
    %683 = arith.mulf %682, %676 : vector<1x32xf32>
    %684 = arith.addf %681, %683 : vector<1x32xf32>
    %685 = arith.addf %672, %684 : vector<1x32xf32>
    %cst_269 = arith.constant 0.606530666 : f32
    %686 = vector.broadcast %cst_269 : f32 to vector<1x32xf32>
    %687 = arith.mulf %686, %685 : vector<1x32xf32>
    %688 = vector.extract_strided_slice %472 {offsets = [14, 0], sizes = [1, 32], strides = [1, 1]} : vector<16x32xf32> to vector<1x32xf32>
    %689 = arith.cmpf oge, %687, %688 : vector<1x32xf32>
    %690 = arith.extui %689 : vector<1x32xi1> to vector<1x32xi32>
    %691 = arith.sitofp %690 : vector<1x32xi32> to vector<1x32xf32>
    %c0_270 = arith.constant 0 : index
    %c14_271 = arith.constant 14 : index
    %c0_272 = arith.constant 0 : index
    %692 = vector.load %arg8[%c0_270, %c14_271, %c0_272] : memref<1x16x32xf32, #tpu.memory_space<vmem>>, vector<1x1x32xf32>
    %693 = vector.shape_cast %692 : vector<1x1x32xf32> to vector<1x32xf32>
    %694 = vector.shape_cast %691 : vector<1x32xf32> to vector<1x1x32xf32>
    tpu.vector_store %arg8[%c0_270, %c14_271, %c0_272], %694 {strides = array<i32>} : memref<1x16x32xf32, #tpu.memory_space<vmem>>, vector<1x1x32xf32>,
    %cst_273 = arith.constant 0.606530666 : f32
    %695 = vector.broadcast %cst_273 : f32 to vector<1x32xf32>
    %696 = arith.mulf %695, %684 : vector<1x32xf32>
    %cst_274 = arith.constant -2.71828175 : f32
    %697 = vector.broadcast %cst_274 : f32 to vector<1x32xf32>
    %698 = arith.mulf %697, %691 : vector<1x32xf32>
    %699 = arith.addf %696, %698 : vector<1x32xf32>
    %700 = arith.addf %687, %699 : vector<1x32xf32>
    %cst_275 = arith.constant 0.606530666 : f32
    %701 = vector.broadcast %cst_275 : f32 to vector<1x32xf32>
    %702 = arith.mulf %701, %700 : vector<1x32xf32>
    %703 = vector.extract_strided_slice %472 {offsets = [15, 0], sizes = [1, 32], strides = [1, 1]} : vector<16x32xf32> to vector<1x32xf32>
    %704 = arith.cmpf oge, %702, %703 : vector<1x32xf32>
    %705 = arith.extui %704 : vector<1x32xi1> to vector<1x32xi32>
    %706 = arith.sitofp %705 : vector<1x32xi32> to vector<1x32xf32>
    %c0_276 = arith.constant 0 : index
    %c15_277 = arith.constant 15 : index
    %c0_278 = arith.constant 0 : index
    %707 = vector.load %arg8[%c0_276, %c15_277, %c0_278] : memref<1x16x32xf32, #tpu.memory_space<vmem>>, vector<1x1x32xf32>
    %708 = vector.shape_cast %707 : vector<1x1x32xf32> to vector<1x32xf32>
    %709 = vector.shape_cast %706 : vector<1x32xf32> to vector<1x1x32xf32>
    tpu.vector_store %arg8[%c0_276, %c15_277, %c0_278], %709 {strides = array<i32>} : memref<1x16x32xf32, #tpu.memory_space<vmem>>, vector<1x1x32xf32>,
    return
  }
  func.func @transform_0(%arg0: i32) -> (i32, i32, i32) {
    %c0_i32 = arith.constant 0 : i32
    %c0_i32_0 = arith.constant 0 : i32
    %c0_i32_1 = arith.constant 0 : i32
    return %arg0, %c0_i32, %c0_i32_0 : i32, i32, i32
  }
  func.func @transform_1(%arg0: i32) -> (i32, i32, i32) {
    %c0_i32 = arith.constant 0 : i32
    %c0_i32_0 = arith.constant 0 : i32
    %c0_i32_1 = arith.constant 0 : i32
    return %arg0, %c0_i32, %c0_i32_0 : i32, i32, i32
  }
  func.func @transform_2(%arg0: i32) -> (i32, i32) {
    %c0_i32 = arith.constant 0 : i32
    %c0_i32_0 = arith.constant 0 : i32
    %c0_i32_1 = arith.constant 0 : i32
    return %c0_i32, %c0_i32_0 : i32, i32
  }
  func.func @transform_3(%arg0: i32) -> (i32, i32) {
    %c0_i32 = arith.constant 0 : i32
    %c0_i32_0 = arith.constant 0 : i32
    %c0_i32_1 = arith.constant 0 : i32
    return %c0_i32, %c0_i32_0 : i32, i32
  }
  func.func @transform_4(%arg0: i32) -> (i32, i32) {
    %c0_i32 = arith.constant 0 : i32
    %c0_i32_0 = arith.constant 0 : i32
    %c0_i32_1 = arith.constant 0 : i32
    return %c0_i32, %c0_i32_0 : i32, i32
  }
  func.func @transform_5(%arg0: i32) -> (i32, i32) {
    %c0_i32 = arith.constant 0 : i32
    %c0_i32_0 = arith.constant 0 : i32
    %c0_i32_1 = arith.constant 0 : i32
    return %c0_i32, %c0_i32_0 : i32, i32
  }
  func.func @transform_6(%arg0: i32) -> (i32, i32) {
    %c0_i32 = arith.constant 0 : i32
    %c0_i32_0 = arith.constant 0 : i32
    %c0_i32_1 = arith.constant 0 : i32
    return %c0_i32, %c0_i32_0 : i32, i32
  }
  func.func @transform_7(%arg0: i32) -> (i32, i32, i32) {
    %c0_i32 = arith.constant 0 : i32
    %c0_i32_0 = arith.constant 0 : i32
    %c0_i32_1 = arith.constant 0 : i32
    return %arg0, %c0_i32, %c0_i32_0 : i32, i32, i32
  }
  func.func @transform_8(%arg0: i32) -> (i32, i32, i32) {
    %c0_i32 = arith.constant 0 : i32
    %c0_i32_0 = arith.constant 0 : i32
    %c0_i32_1 = arith.constant 0 : i32
    return %arg0, %c0_i32, %c0_i32_0 : i32, i32, i32
  }
}

</mosaic_0001>

<llo_original>
// kernel: _forward_impl.1
$region0: #{_forward_impl.1}
  #allocation0 [shape = 'u32[]', space=smem, size = 0x4, offset = 0x4, fixed_abs, tag = 'smem constant byte address 0x4 - core index']
  #allocation1 [shape = 'u32[72,128]{1,0:T(1,128)}', space=vmem, size = 0x9000, scoped, tag = 'internal scratch']
  #allocation2 [shape = 'f32[16,64]{1,0:T(8,128)}', space=vmem, size = 0x2000, scoped, tag = 'scratch operand']
  %s0 = inlined_call_operand.vmem [shape: f32[1,16,32], index: 0, kind: input, shape index: {}]
  %s1 = inlined_call_operand.vmem [shape: f32[1,1,8], index: 1, kind: input, shape index: {}]
  %s2 = inlined_call_operand.vmem [shape: f32[16,16], index: 2, kind: input, shape index: {}]
  %s3 = inlined_call_operand.vmem [shape: f32[16,32], index: 3, kind: input, shape index: {}]
  %s4 = inlined_call_operand.vmem [shape: f32[32,8], index: 4, kind: input, shape index: {}]
  %s5 = inlined_call_operand.vmem [shape: f32[4,32], index: 5, kind: input, shape index: {}]
  %s6 = inlined_call_operand.vmem [shape: f32[32,16], index: 6, kind: input, shape index: {}]
  %s7 = inlined_call_operand.vmem [shape: f32[1,16,32], index: 7, kind: output, shape index: {0}]
  %s8 = inlined_call_operand.vmem [shape: f32[1,16,16], index: 8, kind: output, shape index: {1}]
  %9 = xla_tuple %s7, %s8
  %s10 = sld [smem:[#allocation0]]
  $region46: #{_forward_impl.1} parent=0
    _
  %s12 = ssub.s32 1, %s10
  %s13 = scalar_select 0, %s12, %s10
  // Predicated region
  $region2: #{_forward_impl.1} parent=0 // pred_check
    _
  $region3: #{_forward_impl.1} parent=0 // pred_check_branch
    %15 = sbr.rel (0) target = $region5
  $region4: #{_forward_impl.1} parent=0 // pred_region
    _
  $region5: #{_forward_impl.1} parent=0 // pred_fallthru
    _
  // Predicated region
  $region6: #{_forward_impl.1} parent=0 // pred_check
    _
  $region7: #{_forward_impl.1} parent=0 // pred_check_branch
    %17 = sbr.rel (0) target = $region9
  $region8: #{_forward_impl.1} parent=0 // pred_region
    _
  $region9: #{_forward_impl.1} parent=0 // pred_fallthru
    _
  // Predicated region
  $region10: #{_forward_impl.1} parent=0 // pred_check
    _
  $region11: #{_forward_impl.1} parent=0 // pred_check_branch
    %19 = sbr.rel (0) target = $region13
  $region12: #{_forward_impl.1} parent=0 // pred_region
    _
  $region13: #{_forward_impl.1} parent=0 // pred_fallthru
    _
  // Predicated region
  $region14: #{_forward_impl.1} parent=0 // pred_check
    _
  $region15: #{_forward_impl.1} parent=0 // pred_check_branch
    %21 = sbr.rel (0) target = $region17
  $region16: #{_forward_impl.1} parent=0 // pred_region
    _
  $region17: #{_forward_impl.1} parent=0 // pred_fallthru
    _
  // Predicated region
  $region18: #{_forward_impl.1} parent=0 // pred_check
    _
  $region19: #{_forward_impl.1} parent=0 // pred_check_branch
    %23 = sbr.rel (0) target = $region21
  $region20: #{_forward_impl.1} parent=0 // pred_region
    _
  $region21: #{_forward_impl.1} parent=0 // pred_fallthru
    _
  // Predicated region
  $region22: #{_forward_impl.1} parent=0 // pred_check
    _
  $region23: #{_forward_impl.1} parent=0 // pred_check_branch
    %25 = sbr.rel (0) target = $region25
  $region24: #{_forward_impl.1} parent=0 // pred_region
    _
  $region25: #{_forward_impl.1} parent=0 // pred_fallthru
    _
  // Predicated region
  $region26: #{_forward_impl.1} parent=0 // pred_check
    _
  $region27: #{_forward_impl.1} parent=0 // pred_check_branch
    %27 = sbr.rel (0) target = $region29
  $region28: #{_forward_impl.1} parent=0 // pred_region
    _
  $region29: #{_forward_impl.1} parent=0 // pred_fallthru
    _
  %v28 = vld [vmem:[%s2] sm:$0xff]
  %v29 = vld [vmem:[%s2 + $0x8] sm:$0xff]
  %v30 = vld [vmem:[%s3] sm:$0xff]
  %v31 = vld [vmem:[%s3 + $0x8] sm:$0xff]
  %v32 = vld [vmem:[%s4] sm:$0xff]
  %v33 = vld [vmem:[%s4 + $0x8] sm:$0xff]
  %v34 = vld [vmem:[%s4 + $0x10] sm:$0xff]
  %v35 = vld [vmem:[%s4 + $0x18] sm:$0xff]
  %v36 = vld [vmem:[%s5] sm:$0xf]
  %v37 = vld [vmem:[%s6] sm:$0xff]
  %v38 = vld [vmem:[%s6 + $0x8] sm:$0xff]
  %v39 = vld [vmem:[%s6 + $0x10] sm:$0xff]
  %v40 = vld [vmem:[%s6 + $0x18] sm:$0xff]
  %v41 = vld [vmem:[%s1] sm:$0x1]
  %v42 = vld [vmem:[%s0] sm:$0xff]
  %v43 = vld [vmem:[%s0 + $0x8] sm:$0xff]
  %vm44 = vcmask 130048
  %v46 = vsel %vm44, %v28, 0
  %v49 = vsel %vm44, %v29, 0
  %51 = vmatpush.msra.mxu0 0.0
  %52 = vmatpush.msra.mxu0 0.0
  %53 = vmatpush.msra.mxu0 0.0
  %54 = vmatpush.msra.mxu0 0.0
  %55 = vmatpush.msra.mxu0 0.0
  %56 = vmatpush.msra.mxu0 0.0
  %57 = vmatpush.msra.mxu0 0.0
  %58 = vmatpush.msra.mxu0 0.0
  %59 = vmatpush.msra.mxu0 0.0
  %60 = vmatpush.msra.mxu0 0.0
  %61 = vmatpush.msra.mxu0 0.0
  %62 = vmatpush.msra.mxu0 0.0
  %63 = vmatpush.msra.mxu0 0.0
  %64 = vmatpush.msra.mxu0 0.0
  %65 = vmatpush.msra.mxu0 %v43
  %66 = vmatpush.msra.mxu0 %v42
  %67 = vmatmul.f32.gmra.mxu0 %v46
  %v68 = vpop.f32.mrf.mxu0
  %v69 = vadd.f32 0.0, %v68
  %70 = vmatmul.f32.gmra.mxu0 %v49
  %v71 = vpop.f32.mrf.mxu0
  %v72 = vadd.f32 0.0, %v71
  %73 = vdwg.mxu0
  %v75 = vsel %vm44, %v69, 0
  %v78 = vsel %vm44, %v72, 0
  %80 = vmatpush.msra.mxu0 0.0
  %81 = vmatpush.msra.mxu0 0.0
  %82 = vmatpush.msra.mxu0 0.0
  %83 = vmatpush.msra.mxu0 0.0
  %84 = vmatpush.msra.mxu0 0.0
  %85 = vmatpush.msra.mxu0 0.0
  %86 = vmatpush.msra.mxu0 0.0
  %87 = vmatpush.msra.mxu0 0.0
  %88 = vmatpush.msra.mxu0 0.0
  %89 = vmatpush.msra.mxu0 0.0
  %90 = vmatpush.msra.mxu0 0.0
  %91 = vmatpush.msra.mxu0 0.0
  %92 = vmatpush.msra.mxu0 0.0
  %93 = vmatpush.msra.mxu0 0.0
  %94 = vmatpush.msra.mxu0 %v31
  %95 = vmatpush.msra.mxu0 %v30
  %96 = vmatmul.f32.gmra.mxu0 %v75
  %v97 = vpop.f32.mrf.mxu0
  %v98 = vadd.f32 0.0, %v97
  %99 = vmatmul.f32.gmra.mxu0 %v78
  %v100 = vpop.f32.mrf.mxu0
  %v101 = vadd.f32 0.0, %v100
  %102 = vdwg.mxu0
  %103 = vrot.lane.b32.xlu0 %v69, 112
  %v104 = vpop.permute.xlu0 %103
  %105 = vrot.lane.b32.xlu0 %v72, 112
  %v106 = vpop.permute.xlu0 %105
  %v107 = vsel %vm44, %v104, 0
  %v109 = vsel %vm44, %v106, 0
  %111 = vmatpush.msra.mxu0 0.0
  %112 = vmatpush.msra.mxu0 0.0
  %113 = vmatpush.msra.mxu0 0.0
  %114 = vmatpush.msra.mxu0 0.0
  %115 = vmatpush.msra.mxu0 0.0
  %116 = vmatpush.msra.mxu0 0.0
  %117 = vmatpush.msra.mxu0 0.0
  %118 = vmatpush.msra.mxu0 0.0
  %119 = vmatpush.msra.mxu0 0.0
  %120 = vmatpush.msra.mxu0 0.0
  %121 = vmatpush.msra.mxu0 0.0
  %122 = vmatpush.msra.mxu0 0.0
  %123 = vmatpush.msra.mxu0 0.0
  %124 = vmatpush.msra.mxu0 0.0
  %125 = vmatpush.msra.mxu0 %v31
  %126 = vmatpush.msra.mxu0 %v30
  %127 = vmatmul.f32.gmra.mxu0 %v107
  %v128 = vpop.f32.mrf.mxu0
  %v129 = vadd.f32 0.0, %v128
  %130 = vmatmul.f32.gmra.mxu0 %v109
  %v131 = vpop.f32.mrf.mxu0
  %v132 = vadd.f32 0.0, %v131
  %133 = vdwg.mxu0
  %136 = vrot.lane.b32.xlu0 %v129, 32
  %v137 = vpop.permute.xlu0 %136
  %138 = vrot.lane.b32.xlu0 %v132, 32
  %v139 = vpop.permute.xlu0 %138
  %vm142 = vcmask 261120
  %v143 = vsel %vm142, %v98, %v137
  %v144 = vsel %vm142, %v101, %v139
  %v145 = vsub.f32 1.0, %v143
  %v146 = vsub.f32 1.0, %v144
  %vm147 = vcmp.ge.f32.partialorder 0.0, %v145
  %v148 = vsel %vm147, 1, 0
  %v149 = vcvt.s32.f32 %v148
  %vm150 = vcmask 516096
  %151 = vst.msk [vmem:[#allocation2] sm:$0x1] %vm150, %v149
  %v152 = vmul.f32 %v149, -2.7182817
  %v153 = vadd.f32 %v152, 0.0
  %v154 = vadd.f32 %v153, 0.0
  %v155 = vmul.f32 %v154, 0.60653067
  %v157 = vrot.slane %v145, 1
  %vm159 = vcmp.ge.f32.partialorder %v155, %v157
  %v160 = vsel %vm159, 1, 0
  %v161 = vcvt.s32.f32 %v160
  %162 = vst.msk [vmem:[#allocation2 + $0x1] sm:$0x1] %vm150, %v161
  %v163 = vmul.f32 %v153, 0.60653067
  %v164 = vmul.f32 %v161, -2.7182817
  %v165 = vadd.f32 %v163, %v164
  %v166 = vadd.f32 %v155, %v165
  %v167 = vmul.f32 %v166, 0.60653067
  %v168 = vrot.slane %v145, 2
  %vm170 = vcmp.ge.f32.partialorder %v167, %v168
  %v171 = vsel %vm170, 1, 0
  %v172 = vcvt.s32.f32 %v171
  %173 = vst.msk [vmem:[#allocation2 + $0x2] sm:$0x1] %vm150, %v172
  %v174 = vmul.f32 %v165, 0.60653067
  %v175 = vmul.f32 %v172, -2.7182817
  %v176 = vadd.f32 %v174, %v175
  %v177 = vadd.f32 %v167, %v176
  %v178 = vmul.f32 %v177, 0.60653067
  %v179 = vrot.slane %v145, 3
  %vm181 = vcmp.ge.f32.partialorder %v178, %v179
  %v182 = vsel %vm181, 1, 0
  %v183 = vcvt.s32.f32 %v182
  %184 = vst.msk [vmem:[#allocation2 + $0x3] sm:$0x1] %vm150, %v183
  %v185 = vmul.f32 %v176, 0.60653067
  %v186 = vmul.f32 %v183, -2.7182817
  %v187 = vadd.f32 %v185, %v186
  %v188 = vadd.f32 %v178, %v187
  %v189 = vmul.f32 %v188, 0.60653067
  %v190 = vrot.slane %v145, 4
  %vm192 = vcmp.ge.f32.partialorder %v189, %v190
  %v193 = vsel %vm192, 1, 0
  %v194 = vcvt.s32.f32 %v193
  %195 = vst.msk [vmem:[#allocation2 + $0x4] sm:$0x1] %vm150, %v194
  %v196 = vmul.f32 %v187, 0.60653067
  %v197 = vmul.f32 %v194, -2.7182817
  %v198 = vadd.f32 %v196, %v197
  %v199 = vadd.f32 %v189, %v198
  %v200 = vmul.f32 %v199, 0.60653067
  %v201 = vrot.slane %v145, 5
  %vm203 = vcmp.ge.f32.partialorder %v200, %v201
  %v204 = vsel %vm203, 1, 0
  %v205 = vcvt.s32.f32 %v204
  %206 = vst.msk [vmem:[#allocation2 + $0x5] sm:$0x1] %vm150, %v205
  %v207 = vmul.f32 %v198, 0.60653067
  %v208 = vmul.f32 %v205, -2.7182817
  %v209 = vadd.f32 %v207, %v208
  %v210 = vadd.f32 %v200, %v209
  %v211 = vmul.f32 %v210, 0.60653067
  %v212 = vrot.slane %v145, 6
  %vm214 = vcmp.ge.f32.partialorder %v211, %v212
  %v215 = vsel %vm214, 1, 0
  %v216 = vcvt.s32.f32 %v215
  %217 = vst.msk [vmem:[#allocation2 + $0x6] sm:$0x1] %vm150, %v216
  %v218 = vmul.f32 %v209, 0.60653067
  %v219 = vmul.f32 %v216, -2.7182817
  %v220 = vadd.f32 %v218, %v219
  %v221 = vadd.f32 %v211, %v220
  %v222 = vmul.f32 %v221, 0.60653067
  %v223 = vrot.slane %v145, 7
  %vm225 = vcmp.ge.f32.partialorder %v222, %v223
  %v226 = vsel %vm225, 1, 0
  %v227 = vcvt.s32.f32 %v226
  %228 = vst.msk [vmem:[#allocation2 + $0x7] sm:$0x1] %vm150, %v227
  %v229 = vmul.f32 %v220, 0.60653067
  %v230 = vmul.f32 %v227, -2.7182817
  %v231 = vadd.f32 %v229, %v230
  %v232 = vadd.f32 %v222, %v231
  %v233 = vmul.f32 %v232, 0.60653067
  %vm234 = vcmp.ge.f32.partialorder %v233, %v146
  %v235 = vsel %vm234, 1, 0
  %v236 = vcvt.s32.f32 %v235
  %237 = vst.msk [vmem:[#allocation2 + $0x8] sm:$0x1] %vm150, %v236
  %v238 = vmul.f32 %v231, 0.60653067
  %v239 = vmul.f32 %v236, -2.7182817
  %v240 = vadd.f32 %v238, %v239
  %v241 = vadd.f32 %v233, %v240
  %v242 = vmul.f32 %v241, 0.60653067
  %v244 = vrot.slane %v146, 1
  %vm246 = vcmp.ge.f32.partialorder %v242, %v244
  %v247 = vsel %vm246, 1, 0
  %v248 = vcvt.s32.f32 %v247
  %249 = vst.msk [vmem:[#allocation2 + $0x9] sm:$0x1] %vm150, %v248
  %v250 = vmul.f32 %v240, 0.60653067
  %v251 = vmul.f32 %v248, -2.7182817
  %v252 = vadd.f32 %v250, %v251
  %v253 = vadd.f32 %v242, %v252
  %v254 = vmul.f32 %v253, 0.60653067
  %v255 = vrot.slane %v146, 2
  %vm257 = vcmp.ge.f32.partialorder %v254, %v255
  %v258 = vsel %vm257, 1, 0
  %v259 = vcvt.s32.f32 %v258
  %260 = vst.msk [vmem:[#allocation2 + $0xa] sm:$0x1] %vm150, %v259
  %v261 = vmul.f32 %v252, 0.60653067
  %v262 = vmul.f32 %v259, -2.7182817
  %v263 = vadd.f32 %v261, %v262
  %v264 = vadd.f32 %v254, %v263
  %v265 = vmul.f32 %v264, 0.60653067
  %v266 = vrot.slane %v146, 3
  %vm268 = vcmp.ge.f32.partialorder %v265, %v266
  %v269 = vsel %vm268, 1, 0
  %v270 = vcvt.s32.f32 %v269
  %271 = vst.msk [vmem:[#allocation2 + $0xb] sm:$0x1] %vm150, %v270
  %v272 = vmul.f32 %v263, 0.60653067
  %v273 = vmul.f32 %v270, -2.7182817
  %v274 = vadd.f32 %v272, %v273
  %v275 = vadd.f32 %v265, %v274
  %v276 = vmul.f32 %v275, 0.60653067
  %v277 = vrot.slane %v146, 4
  %vm279 = vcmp.ge.f32.partialorder %v276, %v277
  %v280 = vsel %vm279, 1, 0
  %v281 = vcvt.s32.f32 %v280
  %282 = vst.msk [vmem:[#allocation2 + $0xc] sm:$0x1] %vm150, %v281
  %v283 = vmul.f32 %v274, 0.60653067
  %v284 = vmul.f32 %v281, -2.7182817
  %v285 = vadd.f32 %v283, %v284
  %v286 = vadd.f32 %v276, %v285
  %v287 = vmul.f32 %v286, 0.60653067
  %v288 = vrot.slane %v146, 5
  %vm290 = vcmp.ge.f32.partialorder %v287, %v288
  %v291 = vsel %vm290, 1, 0
  %v292 = vcvt.s32.f32 %v291
  %293 = vst.msk [vmem:[#allocation2 + $0xd] sm:$0x1] %vm150, %v292
  %v294 = vmul.f32 %v285, 0.60653067
  %v295 = vmul.f32 %v292, -2.7182817
  %v296 = vadd.f32 %v294, %v295
  %v297 = vadd.f32 %v287, %v296
  %v298 = vmul.f32 %v297, 0.60653067
  %v299 = vrot.slane %v146, 6
  %vm301 = vcmp.ge.f32.partialorder %v298, %v299
  %v302 = vsel %vm301, 1, 0
  %v303 = vcvt.s32.f32 %v302
  %304 = vst.msk [vmem:[#allocation2 + $0xe] sm:$0x1] %vm150, %v303
  %v305 = vmul.f32 %v296, 0.60653067
  %v306 = vmul.f32 %v303, -2.7182817
  %v307 = vadd.f32 %v305, %v306
  %v308 = vadd.f32 %v298, %v307
  %v309 = vmul.f32 %v308, 0.60653067
  %v310 = vrot.slane %v146, 7
  %vm312 = vcmp.ge.f32.partialorder %v309, %v310
  %v313 = vsel %vm312, 1, 0
  %v314 = vcvt.s32.f32 %v313
  %315 = vst.msk [vmem:[#allocation2 + $0xf] sm:$0x1] %vm150, %v314
  %v316 = vld [vmem:[#allocation2] sm:$0xff]
  %v317 = vld [vmem:[#allocation2 + $0x8] sm:$0xff]
  %318 = vmatpush.msra.mxu0 0.0
  %319 = vmatpush.msra.mxu0 0.0
  %320 = vmatpush.msra.mxu0 0.0
  %321 = vmatpush.msra.mxu0 0.0
  %322 = vmatpush.msra.mxu0 0.0
  %323 = vmatpush.msra.mxu0 0.0
  %324 = vmatpush.msra.mxu0 0.0
  %325 = vmatpush.msra.mxu0 0.0
  %326 = vmatpush.msra.mxu0 0.0
  %327 = vmatpush.msra.mxu0 0.0
  %328 = vmatpush.msra.mxu0 0.0
  %329 = vmatpush.msra.mxu0 0.0
  %330 = vmatpush.msra.mxu0 0.0
  %331 = vmatpush.msra.mxu0 0.0
  %332 = vmatpush.msra.mxu0 %v317
  %333 = vmatpush.msra.mxu0 %v316
  %334 = vmatmul.f32.gmra.mxu0 %v46
  %v335 = vpop.f32.mrf.mxu0
  %v336 = vadd.f32 0.0, %v335
  %337 = vmatmul.f32.gmra.mxu0 %v49
  %v338 = vpop.f32.mrf.mxu0
  %v339 = vadd.f32 0.0, %v338
  %340 = vdwg.mxu0
  %v342 = vsel %vm142, %v336, 0
  %v345 = vsel %vm142, %v339, 0
  %347 = vmatpush.msra.mxu0 0.0
  %348 = vmatpush.msra.mxu0 0.0
  %349 = vmatpush.msra.mxu0 0.0
  %350 = vmatpush.msra.mxu0 0.0
  %351 = vmatpush.msra.mxu0 0.0
  %352 = vmatpush.msra.mxu0 0.0
  %353 = vmatpush.msra.mxu0 0.0
  %354 = vmatpush.msra.mxu0 0.0
  %355 = vmatpush.msra.mxu0 0.0
  %356 = vmatpush.msra.mxu0 0.0
  %357 = vmatpush.msra.mxu0 0.0
  %358 = vmatpush.msra.mxu0 0.0
  %359 = vmatpush.msra.mxu0 %v35
  %360 = vmatpush.msra.mxu0 %v34
  %361 = vmatpush.msra.mxu0 %v33
  %362 = vmatpush.msra.mxu0 %v32
  %363 = vmatmul.f32.gmra.mxu0 %v342
  %v364 = vpop.f32.mrf.mxu0
  %v365 = vadd.f32 0.0, %v364
  %366 = vmatmul.f32.gmra.mxu0 %v345
  %v367 = vpop.f32.mrf.mxu0
  %v368 = vadd.f32 0.0, %v367
  %369 = vdwg.mxu0
  %370 = vrot.lane.b32.xlu0 %v336, 96
  %v371 = vpop.permute.xlu0 %370
  %372 = vrot.lane.b32.xlu0 %v339, 96
  %v373 = vpop.permute.xlu0 %372
  %v374 = vsel %vm142, %v371, 0
  %v376 = vsel %vm142, %v373, 0
  %378 = vmatpush.msra.mxu0 0.0
  %379 = vmatpush.msra.mxu0 0.0
  %380 = vmatpush.msra.mxu0 0.0
  %381 = vmatpush.msra.mxu0 0.0
  %382 = vmatpush.msra.mxu0 0.0
  %383 = vmatpush.msra.mxu0 0.0
  %384 = vmatpush.msra.mxu0 0.0
  %385 = vmatpush.msra.mxu0 0.0
  %386 = vmatpush.msra.mxu0 0.0
  %387 = vmatpush.msra.mxu0 0.0
  %388 = vmatpush.msra.mxu0 0.0
  %389 = vmatpush.msra.mxu0 0.0
  %390 = vmatpush.msra.mxu0 %v35
  %391 = vmatpush.msra.mxu0 %v34
  %392 = vmatpush.msra.mxu0 %v33
  %393 = vmatpush.msra.mxu0 %v32
  %394 = vmatmul.f32.gmra.mxu0 %v374
  %v395 = vpop.f32.mrf.mxu0
  %v396 = vadd.f32 0.0, %v395
  %397 = vmatmul.f32.gmra.mxu0 %v376
  %v398 = vpop.f32.mrf.mxu0
  %v399 = vadd.f32 0.0, %v398
  %400 = vdwg.mxu0
  %403 = vrot.lane.b32.xlu0 %v396, 8
  %v404 = vpop.permute.xlu0 %403
  %405 = vrot.lane.b32.xlu0 %v399, 8
  %v406 = vpop.permute.xlu0 %405
  %vm409 = vcmask 64512
  %v410 = vsel %vm409, %v365, %v404
  %v411 = vsel %vm409, %v368, %v406
  %412 = vst.msk [vmem:[%s8] sm:$0xff] %vm44, %v410
  %413 = vst.msk [vmem:[%s8 + $0x8] sm:$0xff] %vm44, %v411
  %v414 = vmul.f32 %v410, 0.5
  %v415 = vmul.f32 %v411, 0.5
  %v416 = vmul.f32 %v414, 1.442695
  %v417 = vpow.pop %v416
  %v418 = vmul.f32 %v415, 1.442695
  %v419 = vpow.pop %v418
  %v421 = vperm.slane %v41, 0
  %425 = vrot.lane.b32.xlu0 %v417, 124
  %v426 = vpop.permute.xlu0 %425
  %427 = vrot.lane.b32.xlu0 %v419, 124
  %v428 = vpop.permute.xlu0 %427
  %v431 = vmul.f32 %v421, %v426
  %v432 = vmul.f32 %v421, %v428
  %v433 = vadd.f32 %v431, %v410
  %v434 = vadd.f32 %v432, %v411
  %435 = vrot.lane.b32.xlu0 %v417, 120
  %v436 = vpop.permute.xlu0 %435
  %437 = vrot.lane.b32.xlu0 %v419, 120
  %v438 = vpop.permute.xlu0 %437
  %v441 = vmul.f32 %v421, %v436
  %v442 = vmul.f32 %v421, %v438
  %445 = vrot.lane.b32.xlu0 %v410, 124
  %v446 = vpop.permute.xlu0 %445
  %447 = vrot.lane.b32.xlu0 %v411, 124
  %v448 = vpop.permute.xlu0 %447
  %v451 = vadd.f32 %v441, %v446
  %v452 = vadd.f32 %v442, %v448
  %vm453 = vcmask 31744
  %v454 = vsel %vm453, %v433, %v451
  %v455 = vsel %vm453, %v434, %v452
  %456 = vmatpush.msra.mxu0 0.0
  %457 = vmatpush.msra.mxu0 0.0
  %458 = vmatpush.msra.mxu0 0.0
  %459 = vmatpush.msra.mxu0 0.0
  %460 = vmatpush.msra.mxu0 0.0
  %461 = vmatpush.msra.mxu0 0.0
  %462 = vmatpush.msra.mxu0 0.0
  %463 = vmatpush.msra.mxu0 0.0
  %464 = vmatpush.msra.mxu0 0.0
  %465 = vmatpush.msra.mxu0 0.0
  %466 = vmatpush.msra.mxu0 0.0
  %467 = vmatpush.msra.mxu0 0.0
  %468 = vmatpush.msra.mxu0 0.0
  %469 = vmatpush.msra.mxu0 0.0
  %470 = vmatpush.msra.mxu0 %v455
  %471 = vmatpush.msra.mxu0 %v454
  %472 = vmatmul.f32.gmra.mxu0 %v46
  %v473 = vpop.f32.mrf.mxu0
  %v474 = vadd.f32 0.0, %v473
  %475 = vmatmul.f32.gmra.mxu0 %v49
  %v476 = vpop.f32.mrf.mxu0
  %v477 = vadd.f32 0.0, %v476
  %478 = vdwg.mxu0
  %v480 = vsel %vm453, %v474, 0
  %v483 = vsel %vm453, %v477, 0
  %vm485 = vcmask 1043456
  %v487 = vsel %vm485, %v36, 0
  %489 = vmatpush.msra.mxu0 0.0
  %490 = vmatpush.msra.mxu0 0.0
  %491 = vmatpush.msra.mxu0 0.0
  %492 = vmatpush.msra.mxu0 0.0
  %493 = vmatpush.msra.mxu0 0.0
  %494 = vmatpush.msra.mxu0 0.0
  %495 = vmatpush.msra.mxu0 0.0
  %496 = vmatpush.msra.mxu0 0.0
  %497 = vmatpush.msra.mxu0 0.0
  %498 = vmatpush.msra.mxu0 0.0
  %499 = vmatpush.msra.mxu0 0.0
  %500 = vmatpush.msra.mxu0 0.0
  %501 = vmatpush.msra.mxu0 0.0
  %502 = vmatpush.msra.mxu0 0.0
  %503 = vmatpush.msra.mxu0 0.0
  %504 = vmatpush.msra.mxu0 %v487
  %505 = vmatmul.f32.gmra.mxu0 %v480
  %v506 = vpop.f32.mrf.mxu0
  %v507 = vadd.f32 0.0, %v506
  %508 = vmatmul.f32.gmra.mxu0 %v483
  %v509 = vpop.f32.mrf.mxu0
  %v510 = vadd.f32 0.0, %v509
  %511 = vdwg.mxu0
  %512 = vrot.lane.b32.xlu0 %v474, 124
  %v513 = vpop.permute.xlu0 %512
  %514 = vrot.lane.b32.xlu0 %v477, 124
  %v515 = vpop.permute.xlu0 %514
  %v516 = vsel %vm453, %v513, 0
  %v518 = vsel %vm453, %v515, 0
  %520 = vmatpush.msra.mxu0 0.0
  %521 = vmatpush.msra.mxu0 0.0
  %522 = vmatpush.msra.mxu0 0.0
  %523 = vmatpush.msra.mxu0 0.0
  %524 = vmatpush.msra.mxu0 0.0
  %525 = vmatpush.msra.mxu0 0.0
  %526 = vmatpush.msra.mxu0 0.0
  %527 = vmatpush.msra.mxu0 0.0
  %528 = vmatpush.msra.mxu0 0.0
  %529 = vmatpush.msra.mxu0 0.0
  %530 = vmatpush.msra.mxu0 0.0
  %531 = vmatpush.msra.mxu0 0.0
  %532 = vmatpush.msra.mxu0 0.0
  %533 = vmatpush.msra.mxu0 0.0
  %534 = vmatpush.msra.mxu0 0.0
  %535 = vmatpush.msra.mxu0 %v487
  %536 = vmatmul.f32.gmra.mxu0 %v516
  %v537 = vpop.f32.mrf.mxu0
  %v538 = vadd.f32 0.0, %v537
  %539 = vmatmul.f32.gmra.mxu0 %v518
  %v540 = vpop.f32.mrf.mxu0
  %v541 = vadd.f32 0.0, %v540
  %542 = vdwg.mxu0
  %545 = vrot.lane.b32.xlu0 %v538, 32
  %v546 = vpop.permute.xlu0 %545
  %547 = vrot.lane.b32.xlu0 %v541, 32
  %v548 = vpop.permute.xlu0 %547
  %v551 = vsel %vm142, %v507, %v546
  %v552 = vsel %vm142, %v510, %v548
  %v553 = vsub.f32 1.0, %v551
  %v554 = vsub.f32 1.0, %v552
  %vm555 = vcmp.ge.f32.partialorder 0.0, %v553
  %v556 = vsel %vm555, 1, 0
  %v557 = vcvt.s32.f32 %v556
  %558 = vst.msk [vmem:[#allocation2] sm:$0x1] %vm150, %v557
  %v559 = vmul.f32 %v557, -2.7182817
  %v560 = vadd.f32 %v559, 0.0
  %v561 = vadd.f32 %v560, 0.0
  %v562 = vmul.f32 %v561, 0.60653067
  %v564 = vrot.slane %v553, 1
  %vm566 = vcmp.ge.f32.partialorder %v562, %v564
  %v567 = vsel %vm566, 1, 0
  %v568 = vcvt.s32.f32 %v567
  %569 = vst.msk [vmem:[#allocation2 + $0x1] sm:$0x1] %vm150, %v568
  %v570 = vmul.f32 %v560, 0.60653067
  %v571 = vmul.f32 %v568, -2.7182817
  %v572 = vadd.f32 %v570, %v571
  %v573 = vadd.f32 %v562, %v572
  %v574 = vmul.f32 %v573, 0.60653067
  %v575 = vrot.slane %v553, 2
  %vm577 = vcmp.ge.f32.partialorder %v574, %v575
  %v578 = vsel %vm577, 1, 0
  %v579 = vcvt.s32.f32 %v578
  %580 = vst.msk [vmem:[#allocation2 + $0x2] sm:$0x1] %vm150, %v579
  %v581 = vmul.f32 %v572, 0.60653067
  %v582 = vmul.f32 %v579, -2.7182817
  %v583 = vadd.f32 %v581, %v582
  %v584 = vadd.f32 %v574, %v583
  %v585 = vmul.f32 %v584, 0.60653067
  %v586 = vrot.slane %v553, 3
  %vm588 = vcmp.ge.f32.partialorder %v585, %v586
  %v589 = vsel %vm588, 1, 0
  %v590 = vcvt.s32.f32 %v589
  %591 = vst.msk [vmem:[#allocation2 + $0x3] sm:$0x1] %vm150, %v590
  %v592 = vmul.f32 %v583, 0.60653067
  %v593 = vmul.f32 %v590, -2.7182817
  %v594 = vadd.f32 %v592, %v593
  %v595 = vadd.f32 %v585, %v594
  %v596 = vmul.f32 %v595, 0.60653067
  %v597 = vrot.slane %v553, 4
  %vm599 = vcmp.ge.f32.partialorder %v596, %v597
  %v600 = vsel %vm599, 1, 0
  %v601 = vcvt.s32.f32 %v600
  %602 = vst.msk [vmem:[#allocation2 + $0x4] sm:$0x1] %vm150, %v601
  %v603 = vmul.f32 %v594, 0.60653067
  %v604 = vmul.f32 %v601, -2.7182817
  %v605 = vadd.f32 %v603, %v604
  %v606 = vadd.f32 %v596, %v605
  %v607 = vmul.f32 %v606, 0.60653067
  %v608 = vrot.slane %v553, 5
  %vm610 = vcmp.ge.f32.partialorder %v607, %v608
  %v611 = vsel %vm610, 1, 0
  %v612 = vcvt.s32.f32 %v611
  %613 = vst.msk [vmem:[#allocation2 + $0x5] sm:$0x1] %vm150, %v612
  %v614 = vmul.f32 %v605, 0.60653067
  %v615 = vmul.f32 %v612, -2.7182817
  %v616 = vadd.f32 %v614, %v615
  %v617 = vadd.f32 %v607, %v616
  %v618 = vmul.f32 %v617, 0.60653067
  %v619 = vrot.slane %v553, 6
  %vm621 = vcmp.ge.f32.partialorder %v618, %v619
  %v622 = vsel %vm621, 1, 0
  %v623 = vcvt.s32.f32 %v622
  %624 = vst.msk [vmem:[#allocation2 + $0x6] sm:$0x1] %vm150, %v623
  %v625 = vmul.f32 %v616, 0.60653067
  %v626 = vmul.f32 %v623, -2.7182817
  %v627 = vadd.f32 %v625, %v626
  %v628 = vadd.f32 %v618, %v627
  %v629 = vmul.f32 %v628, 0.60653067
  %v630 = vrot.slane %v553, 7
  %vm632 = vcmp.ge.f32.partialorder %v629, %v630
  %v633 = vsel %vm632, 1, 0
  %v634 = vcvt.s32.f32 %v633
  %635 = vst.msk [vmem:[#allocation2 + $0x7] sm:$0x1] %vm150, %v634
  %v636 = vmul.f32 %v627, 0.60653067
  %v637 = vmul.f32 %v634, -2.7182817
  %v638 = vadd.f32 %v636, %v637
  %v639 = vadd.f32 %v629, %v638
  %v640 = vmul.f32 %v639, 0.60653067
  %vm641 = vcmp.ge.f32.partialorder %v640, %v554
  %v642 = vsel %vm641, 1, 0
  %v643 = vcvt.s32.f32 %v642
  %644 = vst.msk [vmem:[#allocation2 + $0x8] sm:$0x1] %vm150, %v643
  %v645 = vmul.f32 %v638, 0.60653067
  %v646 = vmul.f32 %v643, -2.7182817
  %v647 = vadd.f32 %v645, %v646
  %v648 = vadd.f32 %v640, %v647
  %v649 = vmul.f32 %v648, 0.60653067
  %v651 = vrot.slane %v554, 1
  %vm653 = vcmp.ge.f32.partialorder %v649, %v651
  %v654 = vsel %vm653, 1, 0
  %v655 = vcvt.s32.f32 %v654
  %656 = vst.msk [vmem:[#allocation2 + $0x9] sm:$0x1] %vm150, %v655
  %v657 = vmul.f32 %v647, 0.60653067
  %v658 = vmul.f32 %v655, -2.7182817
  %v659 = vadd.f32 %v657, %v658
  %v660 = vadd.f32 %v649, %v659
  %v661 = vmul.f32 %v660, 0.60653067
  %v662 = vrot.slane %v554, 2
  %vm664 = vcmp.ge.f32.partialorder %v661, %v662
  %v665 = vsel %vm664, 1, 0
  %v666 = vcvt.s32.f32 %v665
  %667 = vst.msk [vmem:[#allocation2 + $0xa] sm:$0x1] %vm150, %v666
  %v668 = vmul.f32 %v659, 0.60653067
  %v669 = vmul.f32 %v666, -2.7182817
  %v670 = vadd.f32 %v668, %v669
  %v671 = vadd.f32 %v661, %v670
  %v672 = vmul.f32 %v671, 0.60653067
  %v673 = vrot.slane %v554, 3
  %vm675 = vcmp.ge.f32.partialorder %v672, %v673
  %v676 = vsel %vm675, 1, 0
  %v677 = vcvt.s32.f32 %v676
  %678 = vst.msk [vmem:[#allocation2 + $0xb] sm:$0x1] %vm150, %v677
  %v679 = vmul.f32 %v670, 0.60653067
  %v680 = vmul.f32 %v677, -2.7182817
  %v681 = vadd.f32 %v679, %v680
  %v682 = vadd.f32 %v672, %v681
  %v683 = vmul.f32 %v682, 0.60653067
  %v684 = vrot.slane %v554, 4
  %vm686 = vcmp.ge.f32.partialorder %v683, %v684
  %v687 = vsel %vm686, 1, 0
  %v688 = vcvt.s32.f32 %v687
  %689 = vst.msk [vmem:[#allocation2 + $0xc] sm:$0x1] %vm150, %v688
  %v690 = vmul.f32 %v681, 0.60653067
  %v691 = vmul.f32 %v688, -2.7182817
  %v692 = vadd.f32 %v690, %v691
  %v693 = vadd.f32 %v683, %v692
  %v694 = vmul.f32 %v693, 0.60653067
  %v695 = vrot.slane %v554, 5
  %vm697 = vcmp.ge.f32.partialorder %v694, %v695
  %v698 = vsel %vm697, 1, 0
  %v699 = vcvt.s32.f32 %v698
  %700 = vst.msk [vmem:[#allocation2 + $0xd] sm:$0x1] %vm150, %v699
  %v701 = vmul.f32 %v692, 0.60653067
  %v702 = vmul.f32 %v699, -2.7182817
  %v703 = vadd.f32 %v701, %v702
  %v704 = vadd.f32 %v694, %v703
  %v705 = vmul.f32 %v704, 0.60653067
  %v706 = vrot.slane %v554, 6
  %vm708 = vcmp.ge.f32.partialorder %v705, %v706
  %v709 = vsel %vm708, 1, 0
  %v710 = vcvt.s32.f32 %v709
  %711 = vst.msk [vmem:[#allocation2 + $0xe] sm:$0x1] %vm150, %v710
  %v712 = vmul.f32 %v703, 0.60653067
  %v713 = vmul.f32 %v710, -2.7182817
  %v714 = vadd.f32 %v712, %v713
  %v715 = vadd.f32 %v705, %v714
  %v716 = vmul.f32 %v715, 0.60653067
  %v717 = vrot.slane %v554, 7
  %vm719 = vcmp.ge.f32.partialorder %v716, %v717
  %v720 = vsel %vm719, 1, 0
  %v721 = vcvt.s32.f32 %v720
  %722 = vst.msk [vmem:[#allocation2 + $0xf] sm:$0x1] %vm150, %v721
  %v723 = vld [vmem:[#allocation2] sm:$0xff]
  %v724 = vld [vmem:[#allocation2 + $0x8] sm:$0xff]
  %725 = vmatpush.msra.mxu0 0.0
  %726 = vmatpush.msra.mxu0 0.0
  %727 = vmatpush.msra.mxu0 0.0
  %728 = vmatpush.msra.mxu0 0.0
  %729 = vmatpush.msra.mxu0 0.0
  %730 = vmatpush.msra.mxu0 0.0
  %731 = vmatpush.msra.mxu0 0.0
  %732 = vmatpush.msra.mxu0 0.0
  %733 = vmatpush.msra.mxu0 0.0
  %734 = vmatpush.msra.mxu0 0.0
  %735 = vmatpush.msra.mxu0 0.0
  %736 = vmatpush.msra.mxu0 0.0
  %737 = vmatpush.msra.mxu0 0.0
  %738 = vmatpush.msra.mxu0 0.0
  %739 = vmatpush.msra.mxu0 %v724
  %740 = vmatpush.msra.mxu0 %v723
  %741 = vmatmul.f32.gmra.mxu0 %v46
  %v742 = vpop.f32.mrf.mxu0
  %v743 = vadd.f32 0.0, %v742
  %744 = vmatmul.f32.gmra.mxu0 %v49
  %v745 = vpop.f32.mrf.mxu0
  %v746 = vadd.f32 0.0, %v745
  %747 = vdwg.mxu0
  %v749 = vsel %vm142, %v743, 0
  %v752 = vsel %vm142, %v746, 0
  %754 = vmatpush.msra.mxu0 0.0
  %755 = vmatpush.msra.mxu0 0.0
  %756 = vmatpush.msra.mxu0 0.0
  %757 = vmatpush.msra.mxu0 0.0
  %758 = vmatpush.msra.mxu0 0.0
  %759 = vmatpush.msra.mxu0 0.0
  %760 = vmatpush.msra.mxu0 0.0
  %761 = vmatpush.msra.mxu0 0.0
  %762 = vmatpush.msra.mxu0 0.0
  %763 = vmatpush.msra.mxu0 0.0
  %764 = vmatpush.msra.mxu0 0.0
  %765 = vmatpush.msra.mxu0 0.0
  %766 = vmatpush.msra.mxu0 %v40
  %767 = vmatpush.msra.mxu0 %v39
  %768 = vmatpush.msra.mxu0 %v38
  %769 = vmatpush.msra.mxu0 %v37
  %770 = vmatmul.f32.gmra.mxu0 %v749
  %v771 = vpop.f32.mrf.mxu0
  %v772 = vadd.f32 0.0, %v771
  %773 = vmatmul.f32.gmra.mxu0 %v752
  %v774 = vpop.f32.mrf.mxu0
  %v775 = vadd.f32 0.0, %v774
  %776 = vdwg.mxu0
  %777 = vrot.lane.b32.xlu0 %v743, 96
  %v778 = vpop.permute.xlu0 %777
  %779 = vrot.lane.b32.xlu0 %v746, 96
  %v780 = vpop.permute.xlu0 %779
  %v781 = vsel %vm142, %v778, 0
  %v783 = vsel %vm142, %v780, 0
  %785 = vmatpush.msra.mxu0 0.0
  %786 = vmatpush.msra.mxu0 0.0
  %787 = vmatpush.msra.mxu0 0.0
  %788 = vmatpush.msra.mxu0 0.0
  %789 = vmatpush.msra.mxu0 0.0
  %790 = vmatpush.msra.mxu0 0.0
  %791 = vmatpush.msra.mxu0 0.0
  %792 = vmatpush.msra.mxu0 0.0
  %793 = vmatpush.msra.mxu0 0.0
  %794 = vmatpush.msra.mxu0 0.0
  %795 = vmatpush.msra.mxu0 0.0
  %796 = vmatpush.msra.mxu0 0.0
  %797 = vmatpush.msra.mxu0 %v40
  %798 = vmatpush.msra.mxu0 %v39
  %799 = vmatpush.msra.mxu0 %v38
  %800 = vmatpush.msra.mxu0 %v37
  %801 = vmatmul.f32.gmra.mxu0 %v781
  %v802 = vpop.f32.mrf.mxu0
  %v803 = vadd.f32 0.0, %v802
  %804 = vmatmul.f32.gmra.mxu0 %v783
  %v805 = vpop.f32.mrf.mxu0
  %v806 = vadd.f32 0.0, %v805
  %807 = vdwg.mxu0
  %810 = vrot.lane.b32.xlu0 %v803, 16
  %v811 = vpop.permute.xlu0 %810
  %812 = vrot.lane.b32.xlu0 %v806, 16
  %v813 = vpop.permute.xlu0 %812
  %v816 = vsel %vm44, %v772, %v811
  %v817 = vsel %vm44, %v775, %v813
  %v818 = vsub.f32 1.0, %v816
  %v819 = vsub.f32 1.0, %v817
  %vm820 = vcmp.ge.f32.partialorder 0.0, %v818
  %v821 = vsel %vm820, 1, 0
  %v822 = vcvt.s32.f32 %v821
  %vm823 = vcmask 253952
  %824 = vst.msk [vmem:[%s7] sm:$0x1] %vm823, %v822
  %v825 = vmul.f32 %v822, -2.7182817
  %v826 = vadd.f32 %v825, 0.0
  %v827 = vadd.f32 %v826, 0.0
  %v828 = vmul.f32 %v827, 0.60653067
  %v830 = vrot.slane %v818, 1
  %vm832 = vcmp.ge.f32.partialorder %v828, %v830
  %v833 = vsel %vm832, 1, 0
  %v834 = vcvt.s32.f32 %v833
  %835 = vst.msk [vmem:[%s7 + $0x1] sm:$0x1] %vm823, %v834
  %v836 = vmul.f32 %v826, 0.60653067
  %v837 = vmul.f32 %v834, -2.7182817
  %v838 = vadd.f32 %v836, %v837
  %v839 = vadd.f32 %v828, %v838
  %v840 = vmul.f32 %v839, 0.60653067
  %v841 = vrot.slane %v818, 2
  %vm843 = vcmp.ge.f32.partialorder %v840, %v841
  %v844 = vsel %vm843, 1, 0
  %v845 = vcvt.s32.f32 %v844
  %846 = vst.msk [vmem:[%s7 + $0x2] sm:$0x1] %vm823, %v845
  %v847 = vmul.f32 %v838, 0.60653067
  %v848 = vmul.f32 %v845, -2.7182817
  %v849 = vadd.f32 %v847, %v848
  %v850 = vadd.f32 %v840, %v849
  %v851 = vmul.f32 %v850, 0.60653067
  %v852 = vrot.slane %v818, 3
  %vm854 = vcmp.ge.f32.partialorder %v851, %v852
  %v855 = vsel %vm854, 1, 0
  %v856 = vcvt.s32.f32 %v855
  %857 = vst.msk [vmem:[%s7 + $0x3] sm:$0x1] %vm823, %v856
  %v858 = vmul.f32 %v849, 0.60653067
  %v859 = vmul.f32 %v856, -2.7182817
  %v860 = vadd.f32 %v858, %v859
  %v861 = vadd.f32 %v851, %v860
  %v862 = vmul.f32 %v861, 0.60653067
  %v863 = vrot.slane %v818, 4
  %vm865 = vcmp.ge.f32.partialorder %v862, %v863
  %v866 = vsel %vm865, 1, 0
  %v867 = vcvt.s32.f32 %v866
  %868 = vst.msk [vmem:[%s7 + $0x4] sm:$0x1] %vm823, %v867
  %v869 = vmul.f32 %v860, 0.60653067
  %v870 = vmul.f32 %v867, -2.7182817
  %v871 = vadd.f32 %v869, %v870
  %v872 = vadd.f32 %v862, %v871
  %v873 = vmul.f32 %v872, 0.60653067
  %v874 = vrot.slane %v818, 5
  %vm876 = vcmp.ge.f32.partialorder %v873, %v874
  %v877 = vsel %vm876, 1, 0
  %v878 = vcvt.s32.f32 %v877
  %879 = vst.msk [vmem:[%s7 + $0x5] sm:$0x1] %vm823, %v878
  %v880 = vmul.f32 %v871, 0.60653067
  %v881 = vmul.f32 %v878, -2.7182817
  %v882 = vadd.f32 %v880, %v881
  %v883 = vadd.f32 %v873, %v882
  %v884 = vmul.f32 %v883, 0.60653067
  %v885 = vrot.slane %v818, 6
  %vm887 = vcmp.ge.f32.partialorder %v884, %v885
  %v888 = vsel %vm887, 1, 0
  %v889 = vcvt.s32.f32 %v888
  %890 = vst.msk [vmem:[%s7 + $0x6] sm:$0x1] %vm823, %v889
  %v891 = vmul.f32 %v882, 0.60653067
  %v892 = vmul.f32 %v889, -2.7182817
  %v893 = vadd.f32 %v891, %v892
  %v894 = vadd.f32 %v884, %v893
  %v895 = vmul.f32 %v894, 0.60653067
  %v896 = vrot.slane %v818, 7
  %vm898 = vcmp.ge.f32.partialorder %v895, %v896
  %v899 = vsel %vm898, 1, 0
  %v900 = vcvt.s32.f32 %v899
  %901 = vst.msk [vmem:[%s7 + $0x7] sm:$0x1] %vm823, %v900
  %v902 = vmul.f32 %v893, 0.60653067
  %v903 = vmul.f32 %v900, -2.7182817
  %v904 = vadd.f32 %v902, %v903
  %v905 = vadd.f32 %v895, %v904
  %v906 = vmul.f32 %v905, 0.60653067
  %vm907 = vcmp.ge.f32.partialorder %v906, %v819
  %v908 = vsel %vm907, 1, 0
  %v909 = vcvt.s32.f32 %v908
  %910 = vst.msk [vmem:[%s7 + $0x8] sm:$0x1] %vm823, %v909
  %v911 = vmul.f32 %v904, 0.60653067
  %v912 = vmul.f32 %v909, -2.7182817
  %v913 = vadd.f32 %v911, %v912
  %v914 = vadd.f32 %v906, %v913
  %v915 = vmul.f32 %v914, 0.60653067
  %v917 = vrot.slane %v819, 1
  %vm919 = vcmp.ge.f32.partialorder %v915, %v917
  %v920 = vsel %vm919, 1, 0
  %v921 = vcvt.s32.f32 %v920
  %922 = vst.msk [vmem:[%s7 + $0x9] sm:$0x1] %vm823, %v921
  %v923 = vmul.f32 %v913, 0.60653067
  %v924 = vmul.f32 %v921, -2.7182817
  %v925 = vadd.f32 %v923, %v924
  %v926 = vadd.f32 %v915, %v925
  %v927 = vmul.f32 %v926, 0.60653067
  %v928 = vrot.slane %v819, 2
  %vm930 = vcmp.ge.f32.partialorder %v927, %v928
  %v931 = vsel %vm930, 1, 0
  %v932 = vcvt.s32.f32 %v931
  %933 = vst.msk [vmem:[%s7 + $0xa] sm:$0x1] %vm823, %v932
  %v934 = vmul.f32 %v925, 0.60653067
  %v935 = vmul.f32 %v932, -2.7182817
  %v936 = vadd.f32 %v934, %v935
  %v937 = vadd.f32 %v927, %v936
  %v938 = vmul.f32 %v937, 0.60653067
  %v939 = vrot.slane %v819, 3
  %vm941 = vcmp.ge.f32.partialorder %v938, %v939
  %v942 = vsel %vm941, 1, 0
  %v943 = vcvt.s32.f32 %v942
  %944 = vst.msk [vmem:[%s7 + $0xb] sm:$0x1] %vm823, %v943
  %v945 = vmul.f32 %v936, 0.60653067
  %v946 = vmul.f32 %v943, -2.7182817
  %v947 = vadd.f32 %v945, %v946
  %v948 = vadd.f32 %v938, %v947
  %v949 = vmul.f32 %v948, 0.60653067
  %v950 = vrot.slane %v819, 4
  %vm952 = vcmp.ge.f32.partialorder %v949, %v950
  %v953 = vsel %vm952, 1, 0
  %v954 = vcvt.s32.f32 %v953
  %955 = vst.msk [vmem:[%s7 + $0xc] sm:$0x1] %vm823, %v954
  %v956 = vmul.f32 %v947, 0.60653067
  %v957 = vmul.f32 %v954, -2.7182817
  %v958 = vadd.f32 %v956, %v957
  %v959 = vadd.f32 %v949, %v958
  %v960 = vmul.f32 %v959, 0.60653067
  %v961 = vrot.slane %v819, 5
  %vm963 = vcmp.ge.f32.partialorder %v960, %v961
  %v964 = vsel %vm963, 1, 0
  %v965 = vcvt.s32.f32 %v964
  %966 = vst.msk [vmem:[%s7 + $0xd] sm:$0x1] %vm823, %v965
  %v967 = vmul.f32 %v958, 0.60653067
  %v968 = vmul.f32 %v965, -2.7182817
  %v969 = vadd.f32 %v967, %v968
  %v970 = vadd.f32 %v960, %v969
  %v971 = vmul.f32 %v970, 0.60653067
  %v972 = vrot.slane %v819, 6
  %vm974 = vcmp.ge.f32.partialorder %v971, %v972
  %v975 = vsel %vm974, 1, 0
  %v976 = vcvt.s32.f32 %v975
  %977 = vst.msk [vmem:[%s7 + $0xe] sm:$0x1] %vm823, %v976
  %v978 = vmul.f32 %v969, 0.60653067
  %v979 = vmul.f32 %v976, -2.7182817
  %v980 = vadd.f32 %v978, %v979
  %v981 = vadd.f32 %v971, %v980
  %v982 = vmul.f32 %v981, 0.60653067
  %v983 = vrot.slane %v819, 7
  %vm985 = vcmp.ge.f32.partialorder %v982, %v983
  %v986 = vsel %vm985, 1, 0
  %v987 = vcvt.s32.f32 %v986
  %988 = vst.msk [vmem:[%s7 + $0xf] sm:$0x1] %vm823, %v987
  // Predicated region
  $region30: #{_forward_impl.1} parent=0 // pred_check
    _
  $region31: #{_forward_impl.1} parent=0 // pred_check_branch
    %990 = sbr.rel (0) target = $region33
  $region32: #{_forward_impl.1} parent=0 // pred_region
    _
  $region33: #{_forward_impl.1} parent=0 // pred_fallthru
    _
  // Predicated region
  $region34: #{_forward_impl.1} parent=0 // pred_check
    _
  $region35: #{_forward_impl.1} parent=0 // pred_check_branch
    %992 = sbr.rel (0) target = $region37
  $region36: #{_forward_impl.1} parent=0 // pred_region
    _
  $region37: #{_forward_impl.1} parent=0 // pred_fallthru
    _
  // Predicated region
  $region38: #{_forward_impl.1} parent=0 // pred_check
    _
  $region39: #{_forward_impl.1} parent=0 // pred_check_branch
    %994 = sbr.rel (0) target = $region41
  $region40: #{_forward_impl.1} parent=0 // pred_region
    _
  $region41: #{_forward_impl.1} parent=0 // pred_fallthru
    _
  // Predicated region
  $region42: #{_forward_impl.1} parent=0 // pred_check
    _
  $region43: #{_forward_impl.1} parent=0 // pred_check_branch
    %996 = sbr.rel (0) target = $region45
  $region44: #{_forward_impl.1} parent=0 // pred_region
    _
  $region45: #{_forward_impl.1} parent=0 // pred_fallthru
    _

</llo_original>
